<compile_context>
chip_gen: v7x
topology: tpu7x:2x2x1
jax: 0.10.0
libtpu: 0.0.40
codegen_flags: <defaults>
</compile_context>

<pallas_src>
import jax
import jax.numpy as jnp
from jax.experimental import pallas as pl
from jax.experimental.pallas import tpu as pltpu


# ----------------------------------------------------------------------------
# Fused Pallas kernel: 4 x (stride-2 conv + folded-BN bias + ReLU + residual)
# ----------------------------------------------------------------------------
def _make_fused_kernel(num_stages, T0, chans, has_res, compute_dtype):
    """chans = (C_in, C_out_stage1, ..., C_out_stageN)."""

    def kernel(*refs):
        idx = 0
        x0_ref = refs[idx]; idx += 1
        stage_refs = []
        for _ in range(num_stages):                 # (w_all, bias) per stage
            stage_refs.append(refs[idx:idx + 2]); idx += 2
        res_refs = []
        for s in range(num_stages):
            if has_res[s]:
                res_refs.append(refs[idx]); idx += 1
            else:
                res_refs.append(None)
        out_refs = refs[idx:idx + num_stages]; idx += num_stages
        buf_refs = refs[idx:]                       # num_stages-1 f32 buffers

        t_in = T0
        for s in range(num_stages):                 # unrolled at trace time
            w_ref, bias_ref = stage_refs[s]
            c_in = chans[s]
            c_out = chans[s + 1]
            t_out = t_in // 2

            # Conv decomposition (stride 2, k=3, left zero-pad):
            #   y[t] = w0.x[2t-1] + w1.x[2t] + w2.x[2t+1]
            #        = [w1;w2].pair[t] + (w0.odd)[t-1]   with (w0.odd)[-1] = 0
            if s == 0:
                # stage-1 input arrives pre-paired from HBM: row r = [x[2r]|x[2r+1]]
                src = x0_ref[...]                              # (t_out, 2*c_in)
                odd = src[:, c_in:]                            # x[2r+1]
                a = jnp.dot(src, w_ref[pl.ds(c_in, 2 * c_in), :],
                            preferred_element_type=jnp.float32)
            else:
                src_ref = buf_refs[s - 1]                      # (t_in, c_in) f32
                even = src_ref[pl.ds(0, t_out, 2), :].astype(compute_dtype)
                odd = src_ref[pl.ds(1, t_out, 2), :].astype(compute_dtype)
                a = (jnp.dot(even, w_ref[pl.ds(c_in, c_in), :],
                             preferred_element_type=jnp.float32)
                     + jnp.dot(odd, w_ref[pl.ds(2 * c_in, c_in), :],
                               preferred_element_type=jnp.float32))

            b = jnp.dot(odd, w_ref[pl.ds(0, c_in), :],
                        preferred_element_type=jnp.float32)
            zero_row = jnp.zeros((1, c_out), jnp.float32)
            if t_out > 1:
                b_shift = jnp.concatenate([zero_row, b[:t_out - 1, :]], axis=0)
            else:
                b_shift = zero_row

            y = a + b_shift + bias_ref[...]         # BN scale folded into w
            y = jnp.maximum(y, 0.0)                 # ReLU
            if res_refs[s] is not None:             # multi-scale residual add
                y = y + res_refs[s][...].astype(jnp.float32)

            out_refs[s][...] = y.astype(out_refs[s].dtype)
            if s + 1 < num_stages:                  # next stage input stays in VMEM
                buf_refs[s][...] = y.astype(buf_refs[s].dtype)
            t_in = t_out

    return kernel


# ----------------------------------------------------------------------------
# Wrapper: one pallas_call for the whole MultiScaleTDM neck
# ----------------------------------------------------------------------------
def multi_scale_tdm_forward(inps, params, out_indices=(0, 1, 2, 3, 4),
                            compute_dtype=jnp.bfloat16):
    x0 = inps[0]
    N, T, C0 = x0.shape
    num_stages = len(params)
    chans = [C0] + [int(p["w"].shape[2]) for p in params]
    assert T % (2 ** num_stages) == 0, "T must be divisible by 2**num_stages"
    t_outs = [T // (2 ** (s + 1)) for s in range(num_stages)]
    has_res = [(i + 1) < len(inps) for i in range(num_stages)]

    # Free row-major de-interleave of the stage-1 input in HBM:
    # (N, T, C0) -> (N, T/2, 2*C0), row r = [x[2r] | x[2r+1]].  Fed in bf16.
    x0p = x0.reshape(N, T // 2, 2 * C0).astype(compute_dtype)

    args = [x0p]
    in_specs = [pl.BlockSpec((None, T // 2, 2 * C0), lambda n: (n, 0, 0))]
    for p in params:
        K, cin, cout = p["w"].shape
        assert K == 3, "kernel only generated for kernel_size=3"
        # Fold frozen-BN scale into the conv weights (static, one-time under jit)
        # and flatten taps to rows [w0; w1; w2] of a (3*C_in, C_out) matrix.
        w_all = (p["w"] * p["scale"].reshape(1, 1, cout)).reshape(K * cin, cout)
        args += [w_all.astype(compute_dtype),
                 p["bias"].reshape(1, cout).astype(jnp.float32)]
        in_specs += [pl.BlockSpec((K * cin, cout), lambda n: (0, 0)),
                     pl.BlockSpec((1, cout), lambda n: (0, 0))]
    for i in range(num_stages):
        if has_res[i]:
            args.append(inps[i + 1].astype(compute_dtype))
            in_specs.append(pl.BlockSpec((None, t_outs[i], chans[i + 1]),
                                         lambda n: (n, 0, 0)))

    out_shape = tuple(jax.ShapeDtypeStruct((N, t_outs[i], chans[i + 1]), x0.dtype)
                      for i in range(num_stages))
    out_specs = tuple(pl.BlockSpec((None, t_outs[i], chans[i + 1]),
                                   lambda n: (n, 0, 0))
                      for i in range(num_stages))
    # Inter-stage activations stay on-chip (f32: stride-2 sublane loads are
    # only guaranteed for 32-bit element types).
    scratch_shapes = [pltpu.VMEM((t_outs[s], chans[s + 1]), jnp.float32)
                      for s in range(num_stages - 1)]

    kernel = _make_fused_kernel(num_stages, T, tuple(chans), tuple(has_res),
                                compute_dtype)

    stage_outs = pl.pallas_call(
        kernel,
        out_shape=out_shape,
        grid=(N,),
        in_specs=in_specs,
        out_specs=out_specs,
        scratch_shapes=scratch_shapes,
        compiler_params=pltpu.CompilerParams(
            dimension_semantics=("parallel",),
            vmem_limit_bytes=64 * 1024 * 1024),
    )(*args)

    outs = []
    if 0 in out_indices:
        outs.append(x0)
    for i in range(num_stages):
        if (i + 1) in out_indices:
            outs.append(stage_outs[i])
    if len(outs) == 1:
        return outs[0]
    return tuple(outs)


# ----------------------------------------------------------------------------
# Parameter construction (deterministic, synthetic) — mirrors TDM.__init__
# ----------------------------------------------------------------------------
def init_tdm_params(key, in_channels, out_channels=(128, 128, 128, 128),
                    kernel_sizes=(3, 3, 3, 3)):
    params = []
    cin = in_channels
    eps = 1e-5
    for i, cout in enumerate(out_channels):
        key, kw, kg, kb = jax.random.split(key, 4)
        ksz = kernel_sizes[i]
        fan_in = cin * ksz
        w = jax.random.normal(kw, (ksz, cin, cout), jnp.float32) * (2.0 / fan_in) ** 0.5
        gamma = 1.0 + 0.1 * jax.random.normal(kg, (cout,), jnp.float32)
        beta = 0.1 * jax.random.normal(kb, (cout,), jnp.float32)
        running_mean = jnp.zeros((cout,), jnp.float32)
        running_var = jnp.ones((cout,), jnp.float32)
        # fold BN (eval mode) into scale/bias applied to the conv output
        scale = gamma / jnp.sqrt(running_var + eps)
        bias = beta - running_mean * scale
        params.append(dict(w=w, scale=scale, bias=bias))
        cin = cout
    return params


# ----------------------------------------------------------------------------
# Pure-JAX reference (for correctness check)
# ----------------------------------------------------------------------------
def _ref_forward(inps, params, out_indices=(0, 1, 2, 3, 4),
                 compute_dtype=jnp.float32):
    outs = []
    x = inps[0]
    if 0 in out_indices:
        outs.append(x)
    h = x
    for i, p in enumerate(params):
        cout = p["w"].shape[2]
        y = jax.lax.conv_general_dilated(
            h.astype(compute_dtype), p["w"].astype(compute_dtype),
            window_strides=(2,), padding=((1, 1),),
            dimension_numbers=("NWC", "WIO", "NWC"),
            preferred_element_type=jnp.float32)
        y = y * p["scale"].reshape(1, 1, cout) + p["bias"].reshape(1, 1, cout)
        y = jnp.maximum(y, 0.0)
        if (i + 1) < len(inps):
            y = y + inps[i + 1].astype(compute_dtype).astype(jnp.float32)
        if (i + 1) in out_indices:
            outs.append(y.astype(x.dtype))
        h = y
    if len(outs) == 1:
        return outs[0]
    return tuple(outs)


if __name__ == "__main__":
    key = jax.random.PRNGKey(0)
    N, T, C_in, C_out = 2, 32, 64, 128

    k0, k1, k2, kp = jax.random.split(key, 4)
    # multi-scale inputs: inps[0] is the finest scale; deeper scales match the
    # stage output shapes so the residual additions are well defined.
    inps = [
        jax.random.normal(k0, (N, T, C_in), jnp.float32),
        jax.random.normal(k1, (N, T // 2, C_out), jnp.float32),
        jax.random.normal(k2, (N, T // 4, C_out), jnp.float32),
    ]
    params = init_tdm_params(kp, C_in, out_channels=(C_out,) * 4,
                             kernel_sizes=(3, 3, 3, 3))

    # --- f32 MXU path: strict check against the lax.conv reference -----------
    outs32 = multi_scale_tdm_forward(inps, params, compute_dtype=jnp.float32)
    outs32 = jax.block_until_ready(outs32)
    refs32 = _ref_forward(inps, params, compute_dtype=jnp.float32)
    refs32 = jax.block_until_ready(refs32)
    assert len(outs32) == 5
    for o, r in zip(outs32, refs32):
        assert o.shape == r.shape, (o.shape, r.shape)
        assert jnp.allclose(o, r, atol=1e-3, rtol=1e-3), float(jnp.abs(o - r).max())

    # --- bf16 MXU path (recommended on v5e/v6e/v7x): check vs bf16 reference -
    outs16 = multi_scale_tdm_forward(inps, params, compute_dtype=jnp.bfloat16)
    outs16 = jax.block_until_ready(outs16)
    refs16 = _ref_forward(inps, params, compute_dtype=jnp.bfloat16)
    refs16 = jax.block_until_ready(refs16)
    for o, r in zip(outs16, refs16):
        assert o.shape == r.shape, (o.shape, r.shape)
        assert jnp.allclose(o, r, atol=8e-2, rtol=8e-2), float(jnp.abs(o - r).max())

    print("KERNEL_OK")
</pallas_src>

<mosaic_0001>
module attributes {stable_mosaic.version = 11 : i64} {
  func.func @kernel(%arg0: i32, %arg1: memref<1x16x128xf32, #tpu.memory_space<vmem>>, %arg2: memref<192x128xf32, #tpu.memory_space<vmem>>, %arg3: memref<1x128xf32, #tpu.memory_space<vmem>>, %arg4: memref<384x128xf32, #tpu.memory_space<vmem>>, %arg5: memref<1x128xf32, #tpu.memory_space<vmem>>, %arg6: memref<384x128xf32, #tpu.memory_space<vmem>>, %arg7: memref<1x128xf32, #tpu.memory_space<vmem>>, %arg8: memref<384x128xf32, #tpu.memory_space<vmem>>, %arg9: memref<1x128xf32, #tpu.memory_space<vmem>>, %arg10: memref<1x16x128xf32, #tpu.memory_space<vmem>>, %arg11: memref<1x8x128xf32, #tpu.memory_space<vmem>>, %arg12: memref<1x16x128xf32, #tpu.memory_space<vmem>>, %arg13: memref<1x8x128xf32, #tpu.memory_space<vmem>>, %arg14: memref<1x4x128xf32, #tpu.memory_space<vmem>>, %arg15: memref<1x2x128xf32, #tpu.memory_space<vmem>>, %arg16: memref<16x128xf32, #tpu.memory_space<vmem>>, %arg17: memref<8x128xf32, #tpu.memory_space<vmem>>, %arg18: memref<4x128xf32, #tpu.memory_space<vmem>>) attributes {dimension_semantics = [#tpu.dimension_semantics<parallel>], iteration_bounds = array<i64: 2>, scalar_prefetch = 0 : i64, scratch_operands = 3 : i64, tpu.core_type = #tpu.core_type<tc>, window_params = [{transform_indices = @transform_0, window_bounds = array<i64: 1, 16, 128>}, {pipeline_mode = #tpu.pipeline_mode<synchronous>, transform_indices = @transform_1, window_bounds = array<i64: 192, 128>}, {pipeline_mode = #tpu.pipeline_mode<synchronous>, transform_indices = @transform_2, window_bounds = array<i64: 1, 128>}, {pipeline_mode = #tpu.pipeline_mode<synchronous>, transform_indices = @transform_3, window_bounds = array<i64: 384, 128>}, {pipeline_mode = #tpu.pipeline_mode<synchronous>, transform_indices = @transform_4, window_bounds = array<i64: 1, 128>}, {pipeline_mode = #tpu.pipeline_mode<synchronous>, transform_indices = @transform_5, window_bounds = array<i64: 384, 128>}, {pipeline_mode = #tpu.pipeline_mode<synchronous>, transform_indices = @transform_6, window_bounds = array<i64: 1, 128>}, {pipeline_mode = #tpu.pipeline_mode<synchronous>, transform_indices = @transform_7, window_bounds = array<i64: 384, 128>}, {pipeline_mode = #tpu.pipeline_mode<synchronous>, transform_indices = @transform_8, window_bounds = array<i64: 1, 128>}, {transform_indices = @transform_9, window_bounds = array<i64: 1, 16, 128>}, {transform_indices = @transform_10, window_bounds = array<i64: 1, 8, 128>}, {transform_indices = @transform_11, window_bounds = array<i64: 1, 16, 128>}, {transform_indices = @transform_12, window_bounds = array<i64: 1, 8, 128>}, {transform_indices = @transform_13, window_bounds = array<i64: 1, 4, 128>}, {transform_indices = @transform_14, window_bounds = array<i64: 1, 2, 128>}]} {
    %c0 = arith.constant 0 : index
    %c0_0 = arith.constant 0 : index
    %c0_1 = arith.constant 0 : index
    %0 = vector.load %arg1[%c0, %c0_0, %c0_1] : memref<1x16x128xf32, #tpu.memory_space<vmem>>, vector<1x16x128xf32>
    %1 = vector.shape_cast %0 : vector<1x16x128xf32> to vector<16x128xf32>
    %2 = vector.extract_strided_slice %1 {offsets = [0, 64], sizes = [16, 64], strides = [1, 1]} : vector<16x128xf32> to vector<16x64xf32>
    %c64 = arith.constant 64 : index
    %c0_2 = arith.constant 0 : index
    %3 = vector.load %arg2[%c64, %c0_2] : memref<192x128xf32, #tpu.memory_space<vmem>>, vector<128x128xf32>
    %cst = arith.constant dense<0.000000e+00> : vector<16x128xf32>
    %4 = tpu.matmul %1, %3, %cst {dimension_numbers = #tpu.dot_dimension_numbers<[1], [0], [0], [1], [0, 0, 1, 1], [], []>} : vector<16x128xf32>, vector<128x128xf32>, vector<16x128xf32> -> vector<16x128xf32>
    %c0_3 = arith.constant 0 : index
    %c0_4 = arith.constant 0 : index
    %5 = vector.load %arg2[%c0_3, %c0_4] : memref<192x128xf32, #tpu.memory_space<vmem>>, vector<64x128xf32>
    %cst_5 = arith.constant dense<0.000000e+00> : vector<16x128xf32>
    %6 = tpu.matmul %2, %5, %cst_5 {dimension_numbers = #tpu.dot_dimension_numbers<[1], [0], [0], [1], [0, 0, 1, 1], [], []>} : vector<16x64xf32>, vector<64x128xf32>, vector<16x128xf32> -> vector<16x128xf32>
    %cst_6 = arith.constant 0.000000e+00 : f32
    %7 = vector.broadcast %cst_6 : f32 to vector<1x128xf32>
    %8 = vector.extract_strided_slice %6 {offsets = [0, 0], sizes = [15, 128], strides = [1, 1]} : vector<16x128xf32> to vector<15x128xf32>
    %9 = tpu.concatenate %7, %8 in 0 : vector<1x128xf32>, vector<15x128xf32> -> vector<16x128xf32>
    %10 = arith.addf %4, %9 : vector<16x128xf32>
    %c0_7 = arith.constant 0 : index
    %c0_8 = arith.constant 0 : index
    %11 = vector.load %arg3[%c0_7, %c0_8] : memref<1x128xf32, #tpu.memory_space<vmem>>, vector<1x128xf32>
    %12 = vector.broadcast %11 : vector<1x128xf32> to vector<16x128xf32>
    %13 = arith.addf %10, %12 : vector<16x128xf32>
    %cst_9 = arith.constant 0.000000e+00 : f32
    %14 = vector.broadcast %cst_9 : f32 to vector<16x128xf32>
    %15 = arith.maximumf %13, %14 : vector<16x128xf32>
    %c0_10 = arith.constant 0 : index
    %c0_11 = arith.constant 0 : index
    %c0_12 = arith.constant 0 : index
    %16 = vector.load %arg10[%c0_10, %c0_11, %c0_12] : memref<1x16x128xf32, #tpu.memory_space<vmem>>, vector<1x16x128xf32>
    %17 = vector.shape_cast %16 : vector<1x16x128xf32> to vector<16x128xf32>
    %18 = arith.addf %15, %17 : vector<16x128xf32>
    %c0_13 = arith.constant 0 : index
    %c0_14 = arith.constant 0 : index
    %c0_15 = arith.constant 0 : index
    %19 = vector.load %arg12[%c0_13, %c0_14, %c0_15] : memref<1x16x128xf32, #tpu.memory_space<vmem>>, vector<1x16x128xf32>
    %20 = vector.shape_cast %19 : vector<1x16x128xf32> to vector<16x128xf32>
    %21 = vector.shape_cast %18 : vector<16x128xf32> to vector<1x16x128xf32>
    tpu.vector_store %arg12[%c0_13, %c0_14, %c0_15], %21 {strides = array<i32>} : memref<1x16x128xf32, #tpu.memory_space<vmem>>, vector<1x16x128xf32>,
    %c0_16 = arith.constant 0 : index
    %c0_17 = arith.constant 0 : index
    %22 = vector.load %arg16[%c0_16, %c0_17] : memref<16x128xf32, #tpu.memory_space<vmem>>, vector<16x128xf32>
    tpu.vector_store %arg16[%c0_16, %c0_17], %18 {strides = array<i32>} : memref<16x128xf32, #tpu.memory_space<vmem>>, vector<16x128xf32>,
    %c0_18 = arith.constant 0 : index
    %c0_19 = arith.constant 0 : index
    %23 = tpu.strided_load %arg16[%c0_18, %c0_19] {strides = array<i32: 2, 1>} : memref<16x128xf32, #tpu.memory_space<vmem>>, vector<8x128xf32>
    %c1 = arith.constant 1 : index
    %c0_20 = arith.constant 0 : index
    %24 = tpu.strided_load %arg16[%c1, %c0_20] {strides = array<i32: 2, 1>} : memref<16x128xf32, #tpu.memory_space<vmem>>, vector<8x128xf32>
    %c128 = arith.constant 128 : index
    %c0_21 = arith.constant 0 : index
    %25 = vector.load %arg4[%c128, %c0_21] : memref<384x128xf32, #tpu.memory_space<vmem>>, vector<128x128xf32>
    %cst_22 = arith.constant dense<0.000000e+00> : vector<8x128xf32>
    %26 = tpu.matmul %23, %25, %cst_22 {dimension_numbers = #tpu.dot_dimension_numbers<[1], [0], [0], [1], [0, 0, 1, 1], [], []>} : vector<8x128xf32>, vector<128x128xf32>, vector<8x128xf32> -> vector<8x128xf32>
    %c256 = arith.constant 256 : index
    %c0_23 = arith.constant 0 : index
    %27 = vector.load %arg4[%c256, %c0_23] : memref<384x128xf32, #tpu.memory_space<vmem>>, vector<128x128xf32>
    %cst_24 = arith.constant dense<0.000000e+00> : vector<8x128xf32>
    %28 = tpu.matmul %24, %27, %cst_24 {dimension_numbers = #tpu.dot_dimension_numbers<[1], [0], [0], [1], [0, 0, 1, 1], [], []>} : vector<8x128xf32>, vector<128x128xf32>, vector<8x128xf32> -> vector<8x128xf32>
    %29 = arith.addf %26, %28 : vector<8x128xf32>
    %c0_25 = arith.constant 0 : index
    %c0_26 = arith.constant 0 : index
    %30 = vector.load %arg4[%c0_25, %c0_26] : memref<384x128xf32, #tpu.memory_space<vmem>>, vector<128x128xf32>
    %cst_27 = arith.constant dense<0.000000e+00> : vector<8x128xf32>
    %31 = tpu.matmul %24, %30, %cst_27 {dimension_numbers = #tpu.dot_dimension_numbers<[1], [0], [0], [1], [0, 0, 1, 1], [], []>} : vector<8x128xf32>, vector<128x128xf32>, vector<8x128xf32> -> vector<8x128xf32>
    %cst_28 = arith.constant 0.000000e+00 : f32
    %32 = vector.broadcast %cst_28 : f32 to vector<1x128xf32>
    %33 = vector.extract_strided_slice %31 {offsets = [0, 0], sizes = [7, 128], strides = [1, 1]} : vector<8x128xf32> to vector<7x128xf32>
    %34 = tpu.concatenate %32, %33 in 0 : vector<1x128xf32>, vector<7x128xf32> -> vector<8x128xf32>
    %35 = arith.addf %29, %34 : vector<8x128xf32>
    %c0_29 = arith.constant 0 : index
    %c0_30 = arith.constant 0 : index
    %36 = vector.load %arg5[%c0_29, %c0_30] : memref<1x128xf32, #tpu.memory_space<vmem>>, vector<1x128xf32>
    %37 = vector.broadcast %36 : vector<1x128xf32> to vector<8x128xf32>
    %38 = arith.addf %35, %37 : vector<8x128xf32>
    %cst_31 = arith.constant 0.000000e+00 : f32
    %39 = vector.broadcast %cst_31 : f32 to vector<8x128xf32>
    %40 = arith.maximumf %38, %39 : vector<8x128xf32>
    %c0_32 = arith.constant 0 : index
    %c0_33 = arith.constant 0 : index
    %c0_34 = arith.constant 0 : index
    %41 = vector.load %arg11[%c0_32, %c0_33, %c0_34] : memref<1x8x128xf32, #tpu.memory_space<vmem>>, vector<1x8x128xf32>
    %42 = vector.shape_cast %41 : vector<1x8x128xf32> to vector<8x128xf32>
    %43 = arith.addf %40, %42 : vector<8x128xf32>
    %c0_35 = arith.constant 0 : index
    %c0_36 = arith.constant 0 : index
    %c0_37 = arith.constant 0 : index
    %44 = vector.load %arg13[%c0_35, %c0_36, %c0_37] : memref<1x8x128xf32, #tpu.memory_space<vmem>>, vector<1x8x128xf32>
    %45 = vector.shape_cast %44 : vector<1x8x128xf32> to vector<8x128xf32>
    %46 = vector.shape_cast %43 : vector<8x128xf32> to vector<1x8x128xf32>
    tpu.vector_store %arg13[%c0_35, %c0_36, %c0_37], %46 {strides = array<i32>} : memref<1x8x128xf32, #tpu.memory_space<vmem>>, vector<1x8x128xf32>,
    %c0_38 = arith.constant 0 : index
    %c0_39 = arith.constant 0 : index
    %47 = vector.load %arg17[%c0_38, %c0_39] : memref<8x128xf32, #tpu.memory_space<vmem>>, vector<8x128xf32>
    tpu.vector_store %arg17[%c0_38, %c0_39], %43 {strides = array<i32>} : memref<8x128xf32, #tpu.memory_space<vmem>>, vector<8x128xf32>,
    %c0_40 = arith.constant 0 : index
    %c0_41 = arith.constant 0 : index
    %48 = tpu.strided_load %arg17[%c0_40, %c0_41] {strides = array<i32: 2, 1>} : memref<8x128xf32, #tpu.memory_space<vmem>>, vector<4x128xf32>
    %c1_42 = arith.constant 1 : index
    %c0_43 = arith.constant 0 : index
    %49 = tpu.strided_load %arg17[%c1_42, %c0_43] {strides = array<i32: 2, 1>} : memref<8x128xf32, #tpu.memory_space<vmem>>, vector<4x128xf32>
    %c128_44 = arith.constant 128 : index
    %c0_45 = arith.constant 0 : index
    %50 = vector.load %arg6[%c128_44, %c0_45] : memref<384x128xf32, #tpu.memory_space<vmem>>, vector<128x128xf32>
    %cst_46 = arith.constant dense<0.000000e+00> : vector<4x128xf32>
    %51 = tpu.matmul %48, %50, %cst_46 {dimension_numbers = #tpu.dot_dimension_numbers<[1], [0], [0], [1], [0, 0, 1, 1], [], []>} : vector<4x128xf32>, vector<128x128xf32>, vector<4x128xf32> -> vector<4x128xf32>
    %c256_47 = arith.constant 256 : index
    %c0_48 = arith.constant 0 : index
    %52 = vector.load %arg6[%c256_47, %c0_48] : memref<384x128xf32, #tpu.memory_space<vmem>>, vector<128x128xf32>
    %cst_49 = arith.constant dense<0.000000e+00> : vector<4x128xf32>
    %53 = tpu.matmul %49, %52, %cst_49 {dimension_numbers = #tpu.dot_dimension_numbers<[1], [0], [0], [1], [0, 0, 1, 1], [], []>} : vector<4x128xf32>, vector<128x128xf32>, vector<4x128xf32> -> vector<4x128xf32>
    %54 = arith.addf %51, %53 : vector<4x128xf32>
    %c0_50 = arith.constant 0 : index
    %c0_51 = arith.constant 0 : index
    %55 = vector.load %arg6[%c0_50, %c0_51] : memref<384x128xf32, #tpu.memory_space<vmem>>, vector<128x128xf32>
    %cst_52 = arith.constant dense<0.000000e+00> : vector<4x128xf32>
    %56 = tpu.matmul %49, %55, %cst_52 {dimension_numbers = #tpu.dot_dimension_numbers<[1], [0], [0], [1], [0, 0, 1, 1], [], []>} : vector<4x128xf32>, vector<128x128xf32>, vector<4x128xf32> -> vector<4x128xf32>
    %cst_53 = arith.constant 0.000000e+00 : f32
    %57 = vector.broadcast %cst_53 : f32 to vector<1x128xf32>
    %58 = vector.extract_strided_slice %56 {offsets = [0, 0], sizes = [3, 128], strides = [1, 1]} : vector<4x128xf32> to vector<3x128xf32>
    %59 = tpu.concatenate %57, %58 in 0 : vector<1x128xf32>, vector<3x128xf32> -> vector<4x128xf32>
    %60 = arith.addf %54, %59 : vector<4x128xf32>
    %c0_54 = arith.constant 0 : index
    %c0_55 = arith.constant 0 : index
    %61 = vector.load %arg7[%c0_54, %c0_55] : memref<1x128xf32, #tpu.memory_space<vmem>>, vector<1x128xf32>
    %62 = vector.broadcast %61 : vector<1x128xf32> to vector<4x128xf32>
    %63 = arith.addf %60, %62 : vector<4x128xf32>
    %cst_56 = arith.constant 0.000000e+00 : f32
    %64 = vector.broadcast %cst_56 : f32 to vector<4x128xf32>
    %65 = arith.maximumf %63, %64 : vector<4x128xf32>
    %c0_57 = arith.constant 0 : index
    %c0_58 = arith.constant 0 : index
    %c0_59 = arith.constant 0 : index
    %66 = vector.load %arg14[%c0_57, %c0_58, %c0_59] : memref<1x4x128xf32, #tpu.memory_space<vmem>>, vector<1x4x128xf32>
    %67 = vector.shape_cast %66 : vector<1x4x128xf32> to vector<4x128xf32>
    %68 = vector.shape_cast %65 : vector<4x128xf32> to vector<1x4x128xf32>
    tpu.vector_store %arg14[%c0_57, %c0_58, %c0_59], %68 {strides = array<i32>} : memref<1x4x128xf32, #tpu.memory_space<vmem>>, vector<1x4x128xf32>,
    %c0_60 = arith.constant 0 : index
    %c0_61 = arith.constant 0 : index
    %69 = vector.load %arg18[%c0_60, %c0_61] : memref<4x128xf32, #tpu.memory_space<vmem>>, vector<4x128xf32>
    tpu.vector_store %arg18[%c0_60, %c0_61], %65 {strides = array<i32>} : memref<4x128xf32, #tpu.memory_space<vmem>>, vector<4x128xf32>,
    %c0_62 = arith.constant 0 : index
    %c0_63 = arith.constant 0 : index
    %70 = tpu.strided_load %arg18[%c0_62, %c0_63] {strides = array<i32: 2, 1>} : memref<4x128xf32, #tpu.memory_space<vmem>>, vector<2x128xf32>
    %c1_64 = arith.constant 1 : index
    %c0_65 = arith.constant 0 : index
    %71 = tpu.strided_load %arg18[%c1_64, %c0_65] {strides = array<i32: 2, 1>} : memref<4x128xf32, #tpu.memory_space<vmem>>, vector<2x128xf32>
    %c128_66 = arith.constant 128 : index
    %c0_67 = arith.constant 0 : index
    %72 = vector.load %arg8[%c128_66, %c0_67] : memref<384x128xf32, #tpu.memory_space<vmem>>, vector<128x128xf32>
    %cst_68 = arith.constant dense<0.000000e+00> : vector<2x128xf32>
    %73 = tpu.matmul %70, %72, %cst_68 {dimension_numbers = #tpu.dot_dimension_numbers<[1], [0], [0], [1], [0, 0, 1, 1], [], []>} : vector<2x128xf32>, vector<128x128xf32>, vector<2x128xf32> -> vector<2x128xf32>
    %c256_69 = arith.constant 256 : index
    %c0_70 = arith.constant 0 : index
    %74 = vector.load %arg8[%c256_69, %c0_70] : memref<384x128xf32, #tpu.memory_space<vmem>>, vector<128x128xf32>
    %cst_71 = arith.constant dense<0.000000e+00> : vector<2x128xf32>
    %75 = tpu.matmul %71, %74, %cst_71 {dimension_numbers = #tpu.dot_dimension_numbers<[1], [0], [0], [1], [0, 0, 1, 1], [], []>} : vector<2x128xf32>, vector<128x128xf32>, vector<2x128xf32> -> vector<2x128xf32>
    %76 = arith.addf %73, %75 : vector<2x128xf32>
    %c0_72 = arith.constant 0 : index
    %c0_73 = arith.constant 0 : index
    %77 = vector.load %arg8[%c0_72, %c0_73] : memref<384x128xf32, #tpu.memory_space<vmem>>, vector<128x128xf32>
    %cst_74 = arith.constant dense<0.000000e+00> : vector<2x128xf32>
    %78 = tpu.matmul %71, %77, %cst_74 {dimension_numbers = #tpu.dot_dimension_numbers<[1], [0], [0], [1], [0, 0, 1, 1], [], []>} : vector<2x128xf32>, vector<128x128xf32>, vector<2x128xf32> -> vector<2x128xf32>
    %cst_75 = arith.constant 0.000000e+00 : f32
    %79 = vector.broadcast %cst_75 : f32 to vector<1x128xf32>
    %80 = vector.extract_strided_slice %78 {offsets = [0, 0], sizes = [1, 128], strides = [1, 1]} : vector<2x128xf32> to vector<1x128xf32>
    %81 = tpu.concatenate %79, %80 in 0 : vector<1x128xf32>, vector<1x128xf32> -> vector<2x128xf32>
    %82 = arith.addf %76, %81 : vector<2x128xf32>
    %c0_76 = arith.constant 0 : index
    %c0_77 = arith.constant 0 : index
    %83 = vector.load %arg9[%c0_76, %c0_77] : memref<1x128xf32, #tpu.memory_space<vmem>>, vector<1x128xf32>
    %84 = vector.broadcast %83 : vector<1x128xf32> to vector<2x128xf32>
    %85 = arith.addf %82, %84 : vector<2x128xf32>
    %cst_78 = arith.constant 0.000000e+00 : f32
    %86 = vector.broadcast %cst_78 : f32 to vector<2x128xf32>
    %87 = arith.maximumf %85, %86 : vector<2x128xf32>
    %c0_79 = arith.constant 0 : index
    %c0_80 = arith.constant 0 : index
    %c0_81 = arith.constant 0 : index
    %88 = vector.load %arg15[%c0_79, %c0_80, %c0_81] : memref<1x2x128xf32, #tpu.memory_space<vmem>>, vector<1x2x128xf32>
    %89 = vector.shape_cast %88 : vector<1x2x128xf32> to vector<2x128xf32>
    %90 = vector.shape_cast %87 : vector<2x128xf32> to vector<1x2x128xf32>
    tpu.vector_store %arg15[%c0_79, %c0_80, %c0_81], %90 {strides = array<i32>} : memref<1x2x128xf32, #tpu.memory_space<vmem>>, vector<1x2x128xf32>,
    return
  }
  func.func @transform_0(%arg0: i32) -> (i32, i32, i32) {
    %c0_i32 = arith.constant 0 : i32
    %c0_i32_0 = arith.constant 0 : i32
    %c0_i32_1 = arith.constant 0 : i32
    return %arg0, %c0_i32, %c0_i32_0 : i32, i32, i32
  }
  func.func @transform_1(%arg0: i32) -> (i32, i32) {
    %c0_i32 = arith.constant 0 : i32
    %c0_i32_0 = arith.constant 0 : i32
    %c0_i32_1 = arith.constant 0 : i32
    return %c0_i32, %c0_i32_0 : i32, i32
  }
  func.func @transform_2(%arg0: i32) -> (i32, i32) {
    %c0_i32 = arith.constant 0 : i32
    %c0_i32_0 = arith.constant 0 : i32
    %c0_i32_1 = arith.constant 0 : i32
    return %c0_i32, %c0_i32_0 : i32, i32
  }
  func.func @transform_3(%arg0: i32) -> (i32, i32) {
    %c0_i32 = arith.constant 0 : i32
    %c0_i32_0 = arith.constant 0 : i32
    %c0_i32_1 = arith.constant 0 : i32
    return %c0_i32, %c0_i32_0 : i32, i32
  }
  func.func @transform_4(%arg0: i32) -> (i32, i32) {
    %c0_i32 = arith.constant 0 : i32
    %c0_i32_0 = arith.constant 0 : i32
    %c0_i32_1 = arith.constant 0 : i32
    return %c0_i32, %c0_i32_0 : i32, i32
  }
  func.func @transform_5(%arg0: i32) -> (i32, i32) {
    %c0_i32 = arith.constant 0 : i32
    %c0_i32_0 = arith.constant 0 : i32
    %c0_i32_1 = arith.constant 0 : i32
    return %c0_i32, %c0_i32_0 : i32, i32
  }
  func.func @transform_6(%arg0: i32) -> (i32, i32) {
    %c0_i32 = arith.constant 0 : i32
    %c0_i32_0 = arith.constant 0 : i32
    %c0_i32_1 = arith.constant 0 : i32
    return %c0_i32, %c0_i32_0 : i32, i32
  }
  func.func @transform_7(%arg0: i32) -> (i32, i32) {
    %c0_i32 = arith.constant 0 : i32
    %c0_i32_0 = arith.constant 0 : i32
    %c0_i32_1 = arith.constant 0 : i32
    return %c0_i32, %c0_i32_0 : i32, i32
  }
  func.func @transform_8(%arg0: i32) -> (i32, i32) {
    %c0_i32 = arith.constant 0 : i32
    %c0_i32_0 = arith.constant 0 : i32
    %c0_i32_1 = arith.constant 0 : i32
    return %c0_i32, %c0_i32_0 : i32, i32
  }
  func.func @transform_9(%arg0: i32) -> (i32, i32, i32) {
    %c0_i32 = arith.constant 0 : i32
    %c0_i32_0 = arith.constant 0 : i32
    %c0_i32_1 = arith.constant 0 : i32
    return %arg0, %c0_i32, %c0_i32_0 : i32, i32, i32
  }
  func.func @transform_10(%arg0: i32) -> (i32, i32, i32) {
    %c0_i32 = arith.constant 0 : i32
    %c0_i32_0 = arith.constant 0 : i32
    %c0_i32_1 = arith.constant 0 : i32
    return %arg0, %c0_i32, %c0_i32_0 : i32, i32, i32
  }
  func.func @transform_11(%arg0: i32) -> (i32, i32, i32) {
    %c0_i32 = arith.constant 0 : i32
    %c0_i32_0 = arith.constant 0 : i32
    %c0_i32_1 = arith.constant 0 : i32
    return %arg0, %c0_i32, %c0_i32_0 : i32, i32, i32
  }
  func.func @transform_12(%arg0: i32) -> (i32, i32, i32) {
    %c0_i32 = arith.constant 0 : i32
    %c0_i32_0 = arith.constant 0 : i32
    %c0_i32_1 = arith.constant 0 : i32
    return %arg0, %c0_i32, %c0_i32_0 : i32, i32, i32
  }
  func.func @transform_13(%arg0: i32) -> (i32, i32, i32) {
    %c0_i32 = arith.constant 0 : i32
    %c0_i32_0 = arith.constant 0 : i32
    %c0_i32_1 = arith.constant 0 : i32
    return %arg0, %c0_i32, %c0_i32_0 : i32, i32, i32
  }
  func.func @transform_14(%arg0: i32) -> (i32, i32, i32) {
    %c0_i32 = arith.constant 0 : i32
    %c0_i32_0 = arith.constant 0 : i32
    %c0_i32_1 = arith.constant 0 : i32
    return %arg0, %c0_i32, %c0_i32_0 : i32, i32, i32
  }
}

</mosaic_0001>

<llo_original>
// kernel: tpu_custom_call.1
$region0: #{tpu_custom_call.1}
  #allocation0 [shape = 'u32[]', space=smem, size = 0x4, offset = 0x4, fixed_abs, tag = 'smem constant byte address 0x4 - core index']
  #allocation1 [shape = 'u32[144,128]{1,0:T(1,128)}', space=vmem, size = 0x12000, scoped, tag = 'internal scratch']
  #allocation2 [shape = 'f32[16,128]{1,0:T(8,128)}', space=vmem, size = 0x2000, scoped, tag = 'scratch operand']
  #allocation3 [shape = 'f32[8,128]{1,0:T(8,128)}', space=vmem, size = 0x1000, scoped, tag = 'scratch operand']
  #allocation4 [shape = 'f32[4,128]{1,0:T(4,128)}', space=vmem, size = 0x800, scoped, tag = 'scratch operand']
  %s0 = inlined_call_operand.hbm [shape: f32[2,16,128], index: 0, kind: input, shape index: {}]
  %s1 = inlined_call_operand.hbm [shape: f32[192,128], index: 1, kind: input, shape index: {}]
  %s2 = inlined_call_operand.hbm [shape: f32[1,128], index: 2, kind: input, shape index: {}]
  %s3 = inlined_call_operand.hbm [shape: f32[384,128], index: 3, kind: input, shape index: {}]
  %s4 = inlined_call_operand.hbm [shape: f32[1,128], index: 4, kind: input, shape index: {}]
  %s5 = inlined_call_operand.hbm [shape: f32[384,128], index: 5, kind: input, shape index: {}]
  %s6 = inlined_call_operand.hbm [shape: f32[1,128], index: 6, kind: input, shape index: {}]
  %s7 = inlined_call_operand.hbm [shape: f32[384,128], index: 7, kind: input, shape index: {}]
  %s8 = inlined_call_operand.hbm [shape: f32[1,128], index: 8, kind: input, shape index: {}]
  %s9 = inlined_call_operand.hbm [shape: f32[2,16,128], index: 9, kind: input, shape index: {}]
  %s10 = inlined_call_operand.hbm [shape: f32[2,8,128], index: 10, kind: input, shape index: {}]
  %s11 = inlined_call_operand.hbm [shape: f32[2,16,128], index: 11, kind: output, shape index: {0}]
  %s12 = inlined_call_operand.hbm [shape: f32[2,8,128], index: 12, kind: output, shape index: {1}]
  %s13 = inlined_call_operand.hbm [shape: f32[2,4,128], index: 13, kind: output, shape index: {2}]
  %s14 = inlined_call_operand.hbm [shape: f32[2,2,128], index: 14, kind: output, shape index: {3}]
  %15 = xla_tuple %s11, %s12, %s13, %s14
  %s16 = sld [smem:[#allocation0]]
  $region145: #{tpu_custom_call.1} parent=0
    _
  %s18 = ssub.s32 1, %s16
  %s19 = scalar_select 0, %s18, %s16
  $region1: #{tpu_custom_call.1} parent=0
    #allocation5 [shape = 'u8[16384]{0}', space=vmem, size = 0x4000, scoped, tag = 'input window, operand 0']
    #allocation6 [shape = 's32[2]{0}', space=sflag, size = 0x8, scoped, tag = 'scoped memory for tpu_custom_call.1']
    #allocation7 [shape = 's32[2]{0}', space=sflag, size = 0x8, scoped, tag = 'scoped memory for tpu_custom_call.1']
    #allocation8 [shape = 'u8[98304]{0}', space=vmem, size = 0x18000, scoped, tag = 'input window, operand 1, single buffered']
    #allocation9 [shape = 's32[1]{0}', space=sflag, size = 0x4, scoped, tag = 'scoped memory for tpu_custom_call.1']
    #allocation10 [shape = 'u8[512]{0}', space=vmem, size = 0x400, scoped, tag = 'input window, operand 2, single buffered']
    #allocation11 [shape = 'u8[196608]{0}', space=vmem, size = 0x30000, scoped, tag = 'input window, operand 3, single buffered']
    #allocation12 [shape = 's32[1]{0}', space=sflag, size = 0x4, scoped, tag = 'scoped memory for tpu_custom_call.1']
    #allocation13 [shape = 'u8[512]{0}', space=vmem, size = 0x400, scoped, tag = 'input window, operand 4, single buffered']
    #allocation14 [shape = 'u8[196608]{0}', space=vmem, size = 0x30000, scoped, tag = 'input window, operand 5, single buffered']
    #allocation15 [shape = 's32[1]{0}', space=sflag, size = 0x4, scoped, tag = 'scoped memory for tpu_custom_call.1']
    #allocation16 [shape = 'u8[512]{0}', space=vmem, size = 0x400, scoped, tag = 'input window, operand 6, single buffered']
    #allocation17 [shape = 'u8[196608]{0}', space=vmem, size = 0x30000, scoped, tag = 'input window, operand 7, single buffered']
    #allocation18 [shape = 's32[1]{0}', space=sflag, size = 0x4, scoped, tag = 'scoped memory for tpu_custom_call.1']
    #allocation19 [shape = 'u8[512]{0}', space=vmem, size = 0x400, scoped, tag = 'input window, operand 8, single buffered']
    #allocation20 [shape = 'u8[16384]{0}', space=vmem, size = 0x4000, scoped, tag = 'input window, operand 9']
    #allocation21 [shape = 's32[2]{0}', space=sflag, size = 0x8, scoped, tag = 'scoped memory for tpu_custom_call.1']
    #allocation22 [shape = 'u8[8192]{0}', space=vmem, size = 0x2000, scoped, tag = 'input window, operand 10']
    #allocation23 [shape = 'u8[16384]{0}', space=vmem, size = 0x4000, scoped, tag = 'output window, operand 0']
    #allocation24 [shape = 'u8[8192]{0}', space=vmem, size = 0x2000, scoped, tag = 'output window, operand 1']
    #allocation25 [shape = 's32[2]{0}', space=sflag, size = 0x8, scoped, tag = 'scoped memory for tpu_custom_call.1']
    #allocation26 [shape = 'u8[4096]{0}', space=vmem, size = 0x1000, scoped, tag = 'output window, operand 2']
    #allocation27 [shape = 'u8[2048]{0}', space=vmem, size = 0x800, scoped, tag = 'output window, operand 3']
    #allocation28 [shape = 's32[2]{0}', space=sflag, size = 0x8, scoped, tag = 'scoped memory for tpu_custom_call.1']
    %20 = vsyncpa [#allocation6], 0
    %s21 = scalar_lea.sflag [#allocation6], 1
    %22 = vsyncpa %s21, 0
    %23 = vsyncpa [#allocation9], 0
    %24 = vsyncpa [#allocation12], 0
    %25 = vsyncpa [#allocation15], 0
    %26 = vsyncpa [#allocation18], 0
    %27 = vsyncpa [#allocation21], 0
    %s28 = scalar_lea.sflag [#allocation21], 1
    %29 = vsyncpa %s28, 0
    %30 = vsyncpa [#allocation7], 0
    %s31 = scalar_lea.sflag [#allocation7], 1
    %32 = vsyncpa %s31, 0
    %33 = vsyncpa [#allocation25], 0
    %s34 = scalar_lea.sflag [#allocation25], 1
    %35 = vsyncpa %s34, 0
    %36 = vsyncpa [#allocation28], 0
    %s37 = scalar_lea.sflag [#allocation28], 1
    %38 = vsyncpa %s37, 0
    loop: start=0, step=1, limit=4
    $region2: #{tpu_custom_call.1} parent=1 // loop_pre_header
      _
    $region3: #{tpu_custom_call.1} parent=1 // loop_header
      %s40 = sphi 0, %s44
      %p41 = scmp.ge.s32.totalorder %s40, 4
      %s50 = sphi 0, %s52
      %s53 = sphi 0, %s50
      %s54 = sphi 0, %s53
      %s70 = sphi 0, %s54
      %s74 = sphi 0, %s74
      %s76 = sphi 0, %s74
      %s77 = sphi 0, %s76
      %s91 = sphi 0, %s77
      %s95 = sphi 0, %s95
      %s97 = sphi 0, %s95
      %s98 = sphi 0, %s97
      %s112 = sphi 0, %s98
      %s116 = sphi 0, %s116
      %s118 = sphi 0, %s116
      %s119 = sphi 0, %s118
      %s133 = sphi 0, %s119
      %s137 = sphi 0, %s137
      %s139 = sphi 0, %s137
      %s140 = sphi 0, %s139
      %s154 = sphi 0, %s140
      %s158 = sphi 0, %s158
      %s160 = sphi 0, %s158
      %s161 = sphi 0, %s160
      %s175 = sphi 0, %s161
      %s179 = sphi 0, %s179
      %s181 = sphi 0, %s179
      %s182 = sphi 0, %s181
      %s196 = sphi 0, %s182
      %s200 = sphi 0, %s200
      %s202 = sphi 0, %s200
      %s203 = sphi 0, %s202
      %s217 = sphi 0, %s203
      %s221 = sphi 0, %s221
      %s223 = sphi 0, %s221
      %s224 = sphi 0, %s223
      %s238 = sphi 0, %s224
      %s244 = sphi 0, %s246
      %s247 = sphi 0, %s244
      %s248 = sphi 0, %s247
      %s264 = sphi 0, %s248
      %s270 = sphi 0, %s272
      %s273 = sphi 0, %s270
      %s274 = sphi 0, %s273
      %s290 = sphi 0, %s274
      %s296 = sphi 0, %s298
      %s299 = sphi 0, %s296
      %s300 = sphi 0, %s299
      %s316 = sphi 0, %s300
      %s322 = sphi 0, %s324
      %s325 = sphi 0, %s322
      %s326 = sphi 0, %s325
      %s342 = sphi 0, %s326
      %s348 = sphi 0, %s350
      %s351 = sphi 0, %s348
      %s352 = sphi 0, %s351
      %s368 = sphi 0, %s352
      %s374 = sphi 0, %s376
      %s377 = sphi 0, %s374
      %s378 = sphi 0, %s377
      %s394 = sphi 0, %s378
    $region4: #{tpu_custom_call.1} parent=1 // loop_header_branch
      %43 = sbr.rel (%p41) target = $region8
    $region5: #{tpu_custom_call.1} parent=1 // loop_body
      %s45 = ssub.s32 %s40, 1
      %s46 = ssub.s32 %s40, 2
      %s47 = sadd.s32 %s40, 1
      %s48 = ssub.s32 %s40, %s47
      %p49 = scmp.eq.s32.totalorder %s48, 0
      %s51 = sadd.s32 %s50, 1
      %s52 = scalar_select %p49, %s50, %s51
      %p55 = pneg %p49
      %p56 = scmp.eq.s32.totalorder %s40, 1
      %p57 = por %p55, %p56
      %p58 = scmp.ne.s32.totalorder %s50, %s53
      %p59 = scmp.eq.s32.totalorder %s40, 0
      %p60 = por %p58, %p59
      %p61 = scmp.ne.s32.totalorder %s50, %s53
      %p62 = scmp.eq.s32.totalorder %s45, 1
      %p63 = por %p61, %p62
      %p64 = scmp.ne.s32.totalorder %s53, %s54
      %p65 = scmp.eq.s32.totalorder %s45, 0
      %p66 = por %p64, %p65
      %p67 = scmp.ne.s32.totalorder %s53, %s54
      %p68 = scmp.eq.s32.totalorder %s46, 1
      %p69 = por %p67, %p68
      %p71 = scmp.ne.s32.totalorder %s54, %s70
      %p72 = scmp.eq.s32.totalorder %s46, 0
      %p73 = por %p71, %p72
      %s75 = sadd.s32 %s74, 1
      %p78 = scmp.eq.s32.totalorder %s40, 1
      %p79 = scmp.ne.s32.totalorder %s74, %s76
      %p80 = scmp.eq.s32.totalorder %s40, 0
      %p81 = por %p79, %p80
      %p82 = scmp.ne.s32.totalorder %s74, %s76
      %p83 = scmp.eq.s32.totalorder %s45, 1
      %p84 = por %p82, %p83
      %p85 = scmp.ne.s32.totalorder %s76, %s77
      %p86 = scmp.eq.s32.totalorder %s45, 0
      %p87 = por %p85, %p86
      %p88 = scmp.ne.s32.totalorder %s76, %s77
      %p89 = scmp.eq.s32.totalorder %s46, 1
      %p90 = por %p88, %p89
      %p92 = scmp.ne.s32.totalorder %s77, %s91
      %p93 = scmp.eq.s32.totalorder %s46, 0
      %p94 = por %p92, %p93
      %s96 = sadd.s32 %s95, 1
      %p99 = scmp.eq.s32.totalorder %s40, 1
      %p100 = scmp.ne.s32.totalorder %s95, %s97
      %p101 = scmp.eq.s32.totalorder %s40, 0
      %p102 = por %p100, %p101
      %p103 = scmp.ne.s32.totalorder %s95, %s97
      %p104 = scmp.eq.s32.totalorder %s45, 1
      %p105 = por %p103, %p104
      %p106 = scmp.ne.s32.totalorder %s97, %s98
      %p107 = scmp.eq.s32.totalorder %s45, 0
      %p108 = por %p106, %p107
      %p109 = scmp.ne.s32.totalorder %s97, %s98
      %p110 = scmp.eq.s32.totalorder %s46, 1
      %p111 = por %p109, %p110
      %p113 = scmp.ne.s32.totalorder %s98, %s112
      %p114 = scmp.eq.s32.totalorder %s46, 0
      %p115 = por %p113, %p114
      %s117 = sadd.s32 %s116, 1
      %p120 = scmp.eq.s32.totalorder %s40, 1
      %p121 = scmp.ne.s32.totalorder %s116, %s118
      %p122 = scmp.eq.s32.totalorder %s40, 0
      %p123 = por %p121, %p122
      %p124 = scmp.ne.s32.totalorder %s116, %s118
      %p125 = scmp.eq.s32.totalorder %s45, 1
      %p126 = por %p124, %p125
      %p127 = scmp.ne.s32.totalorder %s118, %s119
      %p128 = scmp.eq.s32.totalorder %s45, 0
      %p129 = por %p127, %p128
      %p130 = scmp.ne.s32.totalorder %s118, %s119
      %p131 = scmp.eq.s32.totalorder %s46, 1
      %p132 = por %p130, %p131
      %p134 = scmp.ne.s32.totalorder %s119, %s133
      %p135 = scmp.eq.s32.totalorder %s46, 0
      %p136 = por %p134, %p135
      %s138 = sadd.s32 %s137, 1
      %p141 = scmp.eq.s32.totalorder %s40, 1
      %p142 = scmp.ne.s32.totalorder %s137, %s139
      %p143 = scmp.eq.s32.totalorder %s40, 0
      %p144 = por %p142, %p143
      %p145 = scmp.ne.s32.totalorder %s137, %s139
      %p146 = scmp.eq.s32.totalorder %s45, 1
      %p147 = por %p145, %p146
      %p148 = scmp.ne.s32.totalorder %s139, %s140
      %p149 = scmp.eq.s32.totalorder %s45, 0
      %p150 = por %p148, %p149
      %p151 = scmp.ne.s32.totalorder %s139, %s140
      %p152 = scmp.eq.s32.totalorder %s46, 1
      %p153 = por %p151, %p152
      %p155 = scmp.ne.s32.totalorder %s140, %s154
      %p156 = scmp.eq.s32.totalorder %s46, 0
      %p157 = por %p155, %p156
      %s159 = sadd.s32 %s158, 1
      %p162 = scmp.eq.s32.totalorder %s40, 1
      %p163 = scmp.ne.s32.totalorder %s158, %s160
      %p164 = scmp.eq.s32.totalorder %s40, 0
      %p165 = por %p163, %p164
      %p166 = scmp.ne.s32.totalorder %s158, %s160
      %p167 = scmp.eq.s32.totalorder %s45, 1
      %p168 = por %p166, %p167
      %p169 = scmp.ne.s32.totalorder %s160, %s161
      %p170 = scmp.eq.s32.totalorder %s45, 0
      %p171 = por %p169, %p170
      %p172 = scmp.ne.s32.totalorder %s160, %s161
      %p173 = scmp.eq.s32.totalorder %s46, 1
      %p174 = por %p172, %p173
      %p176 = scmp.ne.s32.totalorder %s161, %s175
      %p177 = scmp.eq.s32.totalorder %s46, 0
      %p178 = por %p176, %p177
      %s180 = sadd.s32 %s179, 1
      %p183 = scmp.eq.s32.totalorder %s40, 1
      %p184 = scmp.ne.s32.totalorder %s179, %s181
      %p185 = scmp.eq.s32.totalorder %s40, 0
      %p186 = por %p184, %p185
      %p187 = scmp.ne.s32.totalorder %s179, %s181
      %p188 = scmp.eq.s32.totalorder %s45, 1
      %p189 = por %p187, %p188
      %p190 = scmp.ne.s32.totalorder %s181, %s182
      %p191 = scmp.eq.s32.totalorder %s45, 0
      %p192 = por %p190, %p191
      %p193 = scmp.ne.s32.totalorder %s181, %s182
      %p194 = scmp.eq.s32.totalorder %s46, 1
      %p195 = por %p193, %p194
      %p197 = scmp.ne.s32.totalorder %s182, %s196
      %p198 = scmp.eq.s32.totalorder %s46, 0
      %p199 = por %p197, %p198
      %s201 = sadd.s32 %s200, 1
      %p204 = scmp.eq.s32.totalorder %s40, 1
      %p205 = scmp.ne.s32.totalorder %s200, %s202
      %p206 = scmp.eq.s32.totalorder %s40, 0
      %p207 = por %p205, %p206
      %p208 = scmp.ne.s32.totalorder %s200, %s202
      %p209 = scmp.eq.s32.totalorder %s45, 1
      %p210 = por %p208, %p209
      %p211 = scmp.ne.s32.totalorder %s202, %s203
      %p212 = scmp.eq.s32.totalorder %s45, 0
      %p213 = por %p211, %p212
      %p214 = scmp.ne.s32.totalorder %s202, %s203
      %p215 = scmp.eq.s32.totalorder %s46, 1
      %p216 = por %p214, %p215
      %p218 = scmp.ne.s32.totalorder %s203, %s217
      %p219 = scmp.eq.s32.totalorder %s46, 0
      %p220 = por %p218, %p219
      %s222 = sadd.s32 %s221, 1
      %p225 = scmp.eq.s32.totalorder %s40, 1
      %p226 = scmp.ne.s32.totalorder %s221, %s223
      %p227 = scmp.eq.s32.totalorder %s40, 0
      %p228 = por %p226, %p227
      %p229 = scmp.ne.s32.totalorder %s221, %s223
      %p230 = scmp.eq.s32.totalorder %s45, 1
      %p231 = por %p229, %p230
      %p232 = scmp.ne.s32.totalorder %s223, %s224
      %p233 = scmp.eq.s32.totalorder %s45, 0
      %p234 = por %p232, %p233
      %p235 = scmp.ne.s32.totalorder %s223, %s224
      %p236 = scmp.eq.s32.totalorder %s46, 1
      %p237 = por %p235, %p236
      %p239 = scmp.ne.s32.totalorder %s224, %s238
      %p240 = scmp.eq.s32.totalorder %s46, 0
      %p241 = por %p239, %p240
      %s242 = ssub.s32 %s40, %s47
      %p243 = scmp.eq.s32.totalorder %s242, 0
      %s245 = sadd.s32 %s244, 1
      %s246 = scalar_select %p243, %s244, %s245
      %p249 = pneg %p243
      %p250 = scmp.eq.s32.totalorder %s40, 1
      %p251 = por %p249, %p250
      %p252 = scmp.ne.s32.totalorder %s244, %s247
      %p253 = scmp.eq.s32.totalorder %s40, 0
      %p254 = por %p252, %p253
      %p255 = scmp.ne.s32.totalorder %s244, %s247
      %p256 = scmp.eq.s32.totalorder %s45, 1
      %p257 = por %p255, %p256
      %p258 = scmp.ne.s32.totalorder %s247, %s248
      %p259 = scmp.eq.s32.totalorder %s45, 0
      %p260 = por %p258, %p259
      %p261 = scmp.ne.s32.totalorder %s247, %s248
      %p262 = scmp.eq.s32.totalorder %s46, 1
      %p263 = por %p261, %p262
      %p265 = scmp.ne.s32.totalorder %s248, %s264
      %p266 = scmp.eq.s32.totalorder %s46, 0
      %p267 = por %p265, %p266
      %s268 = ssub.s32 %s40, %s47
      %p269 = scmp.eq.s32.totalorder %s268, 0
      %s271 = sadd.s32 %s270, 1
      %s272 = scalar_select %p269, %s270, %s271
      %p275 = pneg %p269
      %p276 = scmp.eq.s32.totalorder %s40, 1
      %p277 = por %p275, %p276
      %p278 = scmp.ne.s32.totalorder %s270, %s273
      %p279 = scmp.eq.s32.totalorder %s40, 0
      %p280 = por %p278, %p279
      %p281 = scmp.ne.s32.totalorder %s270, %s273
      %p282 = scmp.eq.s32.totalorder %s45, 1
      %p283 = por %p281, %p282
      %p284 = scmp.ne.s32.totalorder %s273, %s274
      %p285 = scmp.eq.s32.totalorder %s45, 0
      %p286 = por %p284, %p285
      %p287 = scmp.ne.s32.totalorder %s273, %s274
      %p288 = scmp.eq.s32.totalorder %s46, 1
      %p289 = por %p287, %p288
      %p291 = scmp.ne.s32.totalorder %s274, %s290
      %p292 = scmp.eq.s32.totalorder %s46, 0
      %p293 = por %p291, %p292
      %s294 = ssub.s32 %s40, %s47
      %p295 = scmp.eq.s32.totalorder %s294, 0
      %s297 = sadd.s32 %s296, 1
      %s298 = scalar_select %p295, %s296, %s297
      %p301 = pneg %p295
      %p302 = scmp.eq.s32.totalorder %s40, 1
      %p303 = por %p301, %p302
      %p304 = scmp.ne.s32.totalorder %s296, %s299
      %p305 = scmp.eq.s32.totalorder %s40, 0
      %p306 = por %p304, %p305
      %p307 = scmp.ne.s32.totalorder %s296, %s299
      %p308 = scmp.eq.s32.totalorder %s45, 1
      %p309 = por %p307, %p308
      %p310 = scmp.ne.s32.totalorder %s299, %s300
      %p311 = scmp.eq.s32.totalorder %s45, 0
      %p312 = por %p310, %p311
      %p313 = scmp.ne.s32.totalorder %s299, %s300
      %p314 = scmp.eq.s32.totalorder %s46, 1
      %p315 = por %p313, %p314
      %p317 = scmp.ne.s32.totalorder %s300, %s316
      %p318 = scmp.eq.s32.totalorder %s46, 0
      %p319 = por %p317, %p318
      %s320 = ssub.s32 %s40, %s47
      %p321 = scmp.eq.s32.totalorder %s320, 0
      %s323 = sadd.s32 %s322, 1
      %s324 = scalar_select %p321, %s322, %s323
      %p327 = pneg %p321
      %p328 = scmp.eq.s32.totalorder %s40, 1
      %p329 = por %p327, %p328
      %p330 = scmp.ne.s32.totalorder %s322, %s325
      %p331 = scmp.eq.s32.totalorder %s40, 0
      %p332 = por %p330, %p331
      %p333 = scmp.ne.s32.totalorder %s322, %s325
      %p334 = scmp.eq.s32.totalorder %s45, 1
      %p335 = por %p333, %p334
      %p336 = scmp.ne.s32.totalorder %s325, %s326
      %p337 = scmp.eq.s32.totalorder %s45, 0
      %p338 = por %p336, %p337
      %p339 = scmp.ne.s32.totalorder %s325, %s326
      %p340 = scmp.eq.s32.totalorder %s46, 1
      %p341 = por %p339, %p340
      %p343 = scmp.ne.s32.totalorder %s326, %s342
      %p344 = scmp.eq.s32.totalorder %s46, 0
      %p345 = por %p343, %p344
      %s346 = ssub.s32 %s40, %s47
      %p347 = scmp.eq.s32.totalorder %s346, 0
      %s349 = sadd.s32 %s348, 1
      %s350 = scalar_select %p347, %s348, %s349
      %p353 = pneg %p347
      %p354 = scmp.eq.s32.totalorder %s40, 1
      %p355 = por %p353, %p354
      %p356 = scmp.ne.s32.totalorder %s348, %s351
      %p357 = scmp.eq.s32.totalorder %s40, 0
      %p358 = por %p356, %p357
      %p359 = scmp.ne.s32.totalorder %s348, %s351
      %p360 = scmp.eq.s32.totalorder %s45, 1
      %p361 = por %p359, %p360
      %p362 = scmp.ne.s32.totalorder %s351, %s352
      %p363 = scmp.eq.s32.totalorder %s45, 0
      %p364 = por %p362, %p363
      %p365 = scmp.ne.s32.totalorder %s351, %s352
      %p366 = scmp.eq.s32.totalorder %s46, 1
      %p367 = por %p365, %p366
      %p369 = scmp.ne.s32.totalorder %s352, %s368
      %p370 = scmp.eq.s32.totalorder %s46, 0
      %p371 = por %p369, %p370
      %s372 = ssub.s32 %s40, %s47
      %p373 = scmp.eq.s32.totalorder %s372, 0
      %s375 = sadd.s32 %s374, 1
      %s376 = scalar_select %p373, %s374, %s375
      %p379 = pneg %p373
      %p380 = scmp.eq.s32.totalorder %s40, 1
      %p381 = por %p379, %p380
      %p382 = scmp.ne.s32.totalorder %s374, %s377
      %p383 = scmp.eq.s32.totalorder %s40, 0
      %p384 = por %p382, %p383
      %p385 = scmp.ne.s32.totalorder %s374, %s377
      %p386 = scmp.eq.s32.totalorder %s45, 1
      %p387 = por %p385, %p386
      %p388 = scmp.ne.s32.totalorder %s377, %s378
      %p389 = scmp.eq.s32.totalorder %s45, 0
      %p390 = por %p388, %p389
      %p391 = scmp.ne.s32.totalorder %s377, %s378
      %p392 = scmp.eq.s32.totalorder %s46, 1
      %p393 = por %p391, %p392
      %p395 = scmp.ne.s32.totalorder %s378, %s394
      %p396 = scmp.eq.s32.totalorder %s46, 0
      %p397 = por %p395, %p396
      %p398 = scmp.le.s32.totalorder 1, %s40
      %p399 = scmp.lt.s32.totalorder %s40, 3
      %p400 = pnand %p398, %p399
      %p401 = pneg %p400
      // Predicated region
      $region9: #{tpu_custom_call.1} parent=5 // pred_check
        _
      $region10: #{tpu_custom_call.1} parent=5 // pred_check_branch
        %403 = sbr.rel (%p400) target = $region12
      $region11: #{tpu_custom_call.1} parent=5 // pred_region
        %s404 = ssub.s32 %s40, 1
        // Predicated region
        $region13: #{tpu_custom_call.1} parent=11 // pred_check
          %p405 = pneg %p87
        $region14: #{tpu_custom_call.1} parent=11 // pred_check_branch
          %407 = sbr.rel (%p405) target = $region16
        $region15: #{tpu_custom_call.1} parent=11 // pred_region
          %s409 = ssub.s32 3072, 3072
          %410 = vsyncadd [#allocation9], %s409
          %s411 = sshll.u32 [#allocation8], 4
          %s412 = int_to_ptr.vmem [resolvable:$true] %s411
          %417 = dma.hbm_to_vmem [thread:$0]  %s1, 3072, %s412, [#allocation9], 128, 128, 8
        $region16: #{tpu_custom_call.1} parent=11 // pred_fallthru
          _
        // Predicated region
        $region17: #{tpu_custom_call.1} parent=11 // pred_check
          %p418 = pneg %p108
        $region18: #{tpu_custom_call.1} parent=11 // pred_check_branch
          %420 = sbr.rel (%p418) target = $region20
        $region19: #{tpu_custom_call.1} parent=11 // pred_region
          %s422 = ssub.s32 16, 16
          %423 = vsyncadd [#allocation9], %s422
          %s425 = sshll.u32 [#allocation10], 4
          %s426 = int_to_ptr.vmem [resolvable:$true] %s425
          %428 = dma.hbm_to_vmem [thread:$0]  %s2, 16, %s426, [#allocation9]
        $region20: #{tpu_custom_call.1} parent=11 // pred_fallthru
          _
        // Predicated region
        $region21: #{tpu_custom_call.1} parent=11 // pred_check
          %p429 = pneg %p129
        $region22: #{tpu_custom_call.1} parent=11 // pred_check_branch
          %431 = sbr.rel (%p429) target = $region24
        $region23: #{tpu_custom_call.1} parent=11 // pred_region
          %s433 = ssub.s32 6144, 6144
          %434 = vsyncadd [#allocation12], %s433
          %s435 = sshll.u32 [#allocation11], 4
          %s436 = int_to_ptr.vmem [resolvable:$true] %s435
          %441 = dma.hbm_to_vmem [thread:$0]  %s3, 6144, %s436, [#allocation12], 128, 128, 8
        $region24: #{tpu_custom_call.1} parent=11 // pred_fallthru
          _
        // Predicated region
        $region25: #{tpu_custom_call.1} parent=11 // pred_check
          %p442 = pneg %p150
        $region26: #{tpu_custom_call.1} parent=11 // pred_check_branch
          %444 = sbr.rel (%p442) target = $region28
        $region27: #{tpu_custom_call.1} parent=11 // pred_region
          %s446 = ssub.s32 16, 16
          %447 = vsyncadd [#allocation12], %s446
          %s449 = sshll.u32 [#allocation13], 4
          %s450 = int_to_ptr.vmem [resolvable:$true] %s449
          %452 = dma.hbm_to_vmem [thread:$0]  %s4, 16, %s450, [#allocation12]
        $region28: #{tpu_custom_call.1} parent=11 // pred_fallthru
          _
        // Predicated region
        $region29: #{tpu_custom_call.1} parent=11 // pred_check
          %p453 = pneg %p171
        $region30: #{tpu_custom_call.1} parent=11 // pred_check_branch
          %455 = sbr.rel (%p453) target = $region32
        $region31: #{tpu_custom_call.1} parent=11 // pred_region
          %s457 = ssub.s32 6144, 6144
          %458 = vsyncadd [#allocation15], %s457
          %s459 = sshll.u32 [#allocation14], 4
          %s460 = int_to_ptr.vmem [resolvable:$true] %s459
          %465 = dma.hbm_to_vmem [thread:$0]  %s5, 6144, %s460, [#allocation15], 128, 128, 8
        $region32: #{tpu_custom_call.1} parent=11 // pred_fallthru
          _
        // Predicated region
        $region33: #{tpu_custom_call.1} parent=11 // pred_check
          %p466 = pneg %p192
        $region34: #{tpu_custom_call.1} parent=11 // pred_check_branch
          %468 = sbr.rel (%p466) target = $region36
        $region35: #{tpu_custom_call.1} parent=11 // pred_region
          %s470 = ssub.s32 16, 16
          %471 = vsyncadd [#allocation15], %s470
          %s473 = sshll.u32 [#allocation16], 4
          %s474 = int_to_ptr.vmem [resolvable:$true] %s473
          %476 = dma.hbm_to_vmem [thread:$0]  %s6, 16, %s474, [#allocation15]
        $region36: #{tpu_custom_call.1} parent=11 // pred_fallthru
          _
        // Predicated region
        $region37: #{tpu_custom_call.1} parent=11 // pred_check
          %p477 = pneg %p213
        $region38: #{tpu_custom_call.1} parent=11 // pred_check_branch
          %479 = sbr.rel (%p477) target = $region40
        $region39: #{tpu_custom_call.1} parent=11 // pred_region
          %s481 = ssub.s32 6144, 6144
          %482 = vsyncadd [#allocation18], %s481
          %s483 = sshll.u32 [#allocation17], 4
          %s484 = int_to_ptr.vmem [resolvable:$true] %s483
          %489 = dma.hbm_to_vmem [thread:$0]  %s7, 6144, %s484, [#allocation18], 128, 128, 8
        $region40: #{tpu_custom_call.1} parent=11 // pred_fallthru
          _
        // Predicated region
        $region41: #{tpu_custom_call.1} parent=11 // pred_check
          %p490 = pneg %p234
        $region42: #{tpu_custom_call.1} parent=11 // pred_check_branch
          %492 = sbr.rel (%p490) target = $region44
        $region43: #{tpu_custom_call.1} parent=11 // pred_region
          %s494 = ssub.s32 16, 16
          %495 = vsyncadd [#allocation18], %s494
          %s497 = sshll.u32 [#allocation19], 4
          %s498 = int_to_ptr.vmem [resolvable:$true] %s497
          %500 = dma.hbm_to_vmem [thread:$0]  %s8, 16, %s498, [#allocation18]
        $region44: #{tpu_custom_call.1} parent=11 // pred_fallthru
          _
      $region12: #{tpu_custom_call.1} parent=5 // pred_fallthru
        _
      %p501 = scmp.lt.s32.totalorder %s40, 2
      // Predicated region
      $region45: #{tpu_custom_call.1} parent=5 // pred_check
        %p502 = pneg %p501
      $region46: #{tpu_custom_call.1} parent=5 // pred_check_branch
        %504 = sbr.rel (%p502) target = $region48
      $region47: #{tpu_custom_call.1} parent=5 // pred_region
        // Predicated region
        $region49: #{tpu_custom_call.1} parent=47 // pred_check
          %p505 = pneg %p60
        $region50: #{tpu_custom_call.1} parent=47 // pred_check_branch
          %507 = sbr.rel (%p505) target = $region52
        $region51: #{tpu_custom_call.1} parent=47 // pred_region
          %s508 = sand.u32 %s50, 1
          %s509 = scalar_lea.sflag [#allocation6], %s508
          %s510 = sand.u32 %s50, 1
          %s511 = smul.addr %s510, 16
          %s512 = scalar_lea.vmem [#allocation5], %s511
          %s514 = ssub.s32 256, 256
          %515 = vsyncadd %s509, %s514
          %s516 = smul.addr %s40, 2
          %s517 = smul.addr %s516, 128
          %s518 = scalar_lea.hbm %s0, %s517
          %s519 = sshll.u32 %s512, 4
          %s520 = int_to_ptr.vmem [resolvable:$true] %s519
          %525 = dma.hbm_to_vmem [thread:$0]  %s518, 256, %s520, %s509, 128, 128, 8
        $region52: #{tpu_custom_call.1} parent=47 // pred_fallthru
          _
        // Predicated region
        $region53: #{tpu_custom_call.1} parent=47 // pred_check
          %p526 = pneg %p254
        $region54: #{tpu_custom_call.1} parent=47 // pred_check_branch
          %528 = sbr.rel (%p526) target = $region56
        $region55: #{tpu_custom_call.1} parent=47 // pred_region
          %s529 = sand.u32 %s40, 1
          %s530 = scalar_lea.sflag [#allocation21], %s529
          %s531 = sand.u32 %s244, 1
          %s532 = smul.addr %s531, 16
          %s533 = scalar_lea.vmem [#allocation20], %s532
          %s535 = ssub.s32 256, 256
          %536 = vsyncadd %s530, %s535
          %s537 = smul.addr %s40, 2
          %s538 = smul.addr %s537, 128
          %s539 = scalar_lea.hbm %s9, %s538
          %s540 = sshll.u32 %s533, 4
          %s541 = int_to_ptr.vmem [resolvable:$true] %s540
          %546 = dma.hbm_to_vmem [thread:$0]  %s539, 256, %s541, %s530, 128, 128, 8
        $region56: #{tpu_custom_call.1} parent=47 // pred_fallthru
          _
        // Predicated region
        $region57: #{tpu_custom_call.1} parent=47 // pred_check
          %p547 = pneg %p280
        $region58: #{tpu_custom_call.1} parent=47 // pred_check_branch
          %549 = sbr.rel (%p547) target = $region60
        $region59: #{tpu_custom_call.1} parent=47 // pred_region
          %s550 = sand.u32 %s40, 1
          %s551 = scalar_lea.sflag [#allocation21], %s550
          %s552 = sand.u32 %s270, 1
          %s553 = smul.addr %s552, 8
          %s554 = scalar_lea.vmem [#allocation22], %s553
          %s556 = ssub.s32 128, 128
          %557 = vsyncadd %s551, %s556
          %s558 = smul.addr %s40, 128
          %s559 = scalar_lea.hbm %s10, %s558
          %s561 = sshll.u32 %s554, 4
          %s562 = int_to_ptr.vmem [resolvable:$true] %s561
          %564 = dma.hbm_to_vmem [thread:$0]  %s559, 128, %s562, %s551
        $region60: #{tpu_custom_call.1} parent=47 // pred_fallthru
          _
      $region48: #{tpu_custom_call.1} parent=5 // pred_fallthru
        _
      %p565 = scmp.le.s32.totalorder 1, %s40
      %p566 = scmp.lt.s32.totalorder %s40, 3
      %p567 = pnand %p565, %p566
      %p568 = pneg %p567
      // Predicated region
      $region61: #{tpu_custom_call.1} parent=5 // pred_check
        _
      $region62: #{tpu_custom_call.1} parent=5 // pred_check_branch
        %570 = sbr.rel (%p567) target = $region64
      $region63: #{tpu_custom_call.1} parent=5 // pred_region
        %s571 = ssub.s32 %s40, 1
        %s572 = sand.u32 %s53, 1
        %s573 = scalar_lea.sflag [#allocation6], %s572
        %s574 = sand.u32 %s53, 1
        %s575 = smul.addr %s574, 16
        %s576 = scalar_lea.vmem [#allocation5], %s575
        // Predicated region
        $region65: #{tpu_custom_call.1} parent=63 // pred_check
          %p577 = pneg %p66
        $region66: #{tpu_custom_call.1} parent=63 // pred_check_branch
          %579 = sbr.rel (%p577) target = $region68
        $region67: #{tpu_custom_call.1} parent=63 // pred_region
          %580 = dma.done %s573, 256
        $region68: #{tpu_custom_call.1} parent=63 // pred_fallthru
          _
        // Predicated region
        $region69: #{tpu_custom_call.1} parent=63 // pred_check
          %p581 = pneg %p87
        $region70: #{tpu_custom_call.1} parent=63 // pred_check_branch
          %583 = sbr.rel (%p581) target = $region72
        $region71: #{tpu_custom_call.1} parent=63 // pred_region
          %584 = dma.done [#allocation9], 3072
        $region72: #{tpu_custom_call.1} parent=63 // pred_fallthru
          _
        // Predicated region
        $region73: #{tpu_custom_call.1} parent=63 // pred_check
          %p585 = pneg %p108
        $region74: #{tpu_custom_call.1} parent=63 // pred_check_branch
          %587 = sbr.rel (%p585) target = $region76
        $region75: #{tpu_custom_call.1} parent=63 // pred_region
          %588 = dma.done [#allocation9], 16
        $region76: #{tpu_custom_call.1} parent=63 // pred_fallthru
          _
        // Predicated region
        $region77: #{tpu_custom_call.1} parent=63 // pred_check
          %p589 = pneg %p129
        $region78: #{tpu_custom_call.1} parent=63 // pred_check_branch
          %591 = sbr.rel (%p589) target = $region80
        $region79: #{tpu_custom_call.1} parent=63 // pred_region
          %592 = dma.done [#allocation12], 6144
        $region80: #{tpu_custom_call.1} parent=63 // pred_fallthru
          _
        // Predicated region
        $region81: #{tpu_custom_call.1} parent=63 // pred_check
          %p593 = pneg %p150
        $region82: #{tpu_custom_call.1} parent=63 // pred_check_branch
          %595 = sbr.rel (%p593) target = $region84
        $region83: #{tpu_custom_call.1} parent=63 // pred_region
          %596 = dma.done [#allocation12], 16
        $region84: #{tpu_custom_call.1} parent=63 // pred_fallthru
          _
        // Predicated region
        $region85: #{tpu_custom_call.1} parent=63 // pred_check
          %p597 = pneg %p171
        $region86: #{tpu_custom_call.1} parent=63 // pred_check_branch
          %599 = sbr.rel (%p597) target = $region88
        $region87: #{tpu_custom_call.1} parent=63 // pred_region
          %600 = dma.done [#allocation15], 6144
        $region88: #{tpu_custom_call.1} parent=63 // pred_fallthru
          _
        // Predicated region
        $region89: #{tpu_custom_call.1} parent=63 // pred_check
          %p601 = pneg %p192
        $region90: #{tpu_custom_call.1} parent=63 // pred_check_branch
          %603 = sbr.rel (%p601) target = $region92
        $region91: #{tpu_custom_call.1} parent=63 // pred_region
          %604 = dma.done [#allocation15], 16
        $region92: #{tpu_custom_call.1} parent=63 // pred_fallthru
          _
        // Predicated region
        $region93: #{tpu_custom_call.1} parent=63 // pred_check
          %p605 = pneg %p213
        $region94: #{tpu_custom_call.1} parent=63 // pred_check_branch
          %607 = sbr.rel (%p605) target = $region96
        $region95: #{tpu_custom_call.1} parent=63 // pred_region
          %608 = dma.done [#allocation18], 6144
        $region96: #{tpu_custom_call.1} parent=63 // pred_fallthru
          _
        // Predicated region
        $region97: #{tpu_custom_call.1} parent=63 // pred_check
          %p609 = pneg %p234
        $region98: #{tpu_custom_call.1} parent=63 // pred_check_branch
          %611 = sbr.rel (%p609) target = $region100
        $region99: #{tpu_custom_call.1} parent=63 // pred_region
          %612 = dma.done [#allocation18], 16
        $region100: #{tpu_custom_call.1} parent=63 // pred_fallthru
          _
        %s613 = sand.u32 %s45, 1
        %s614 = scalar_lea.sflag [#allocation21], %s613
        %s615 = sand.u32 %s247, 1
        %s616 = smul.addr %s615, 16
        %s617 = scalar_lea.vmem [#allocation20], %s616
        // Predicated region
        $region101: #{tpu_custom_call.1} parent=63 // pred_check
          %p618 = pneg %p260
        $region102: #{tpu_custom_call.1} parent=63 // pred_check_branch
          %620 = sbr.rel (%p618) target = $region104
        $region103: #{tpu_custom_call.1} parent=63 // pred_region
          %621 = dma.done %s614, 256
        $region104: #{tpu_custom_call.1} parent=63 // pred_fallthru
          _
        %s622 = sand.u32 %s45, 1
        %s623 = scalar_lea.sflag [#allocation21], %s622
        %s624 = sand.u32 %s273, 1
        %s625 = smul.addr %s624, 8
        %s626 = scalar_lea.vmem [#allocation22], %s625
        // Predicated region
        $region105: #{tpu_custom_call.1} parent=63 // pred_check
          %p627 = pneg %p286
        $region106: #{tpu_custom_call.1} parent=63 // pred_check_branch
          %629 = sbr.rel (%p627) target = $region108
        $region107: #{tpu_custom_call.1} parent=63 // pred_region
          %630 = dma.done %s623, 128
        $region108: #{tpu_custom_call.1} parent=63 // pred_fallthru
          _
        %s631 = sand.u32 %s53, 1
        %s632 = scalar_lea.sflag [#allocation6], %s631
        %s633 = sand.u32 %s53, 1
        %s634 = smul.addr %s633, 16
        %s635 = scalar_lea.vmem [#allocation5], %s634
        %p636 = pneg %p66
        %p637 = pneg %p63
        %p638 = pneg %p87
        %p639 = pneg %p84
        %p640 = pneg %p108
        %p641 = pneg %p105
        %p642 = pneg %p129
        %p643 = pneg %p126
        %p644 = pneg %p150
        %p645 = pneg %p147
        %p646 = pneg %p171
        %p647 = pneg %p168
        %p648 = pneg %p192
        %p649 = pneg %p189
        %p650 = pneg %p213
        %p651 = pneg %p210
        %p652 = pneg %p234
        %p653 = pneg %p231
        %s654 = sand.u32 %s45, 1
        %s655 = scalar_lea.sflag [#allocation21], %s654
        %s656 = sand.u32 %s247, 1
        %s657 = smul.addr %s656, 16
        %s658 = scalar_lea.vmem [#allocation20], %s657
        %p659 = pneg %p260
        %p660 = pneg %p257
        %s661 = sand.u32 %s45, 1
        %s662 = scalar_lea.sflag [#allocation21], %s661
        %s663 = sand.u32 %s273, 1
        %s664 = smul.addr %s663, 8
        %s665 = scalar_lea.vmem [#allocation22], %s664
        %p666 = pneg %p286
        %p667 = pneg %p283
        %p668 = pneg %p312
        %p669 = pneg %p309
        %s670 = sand.u32 %s299, 1
        %s671 = scalar_lea.sflag [#allocation7], %s670
        %s672 = sand.u32 %s299, 1
        %s673 = smul.addr %s672, 16
        %s674 = scalar_lea.vmem [#allocation23], %s673
        %p675 = pneg %p338
        %p676 = pneg %p335
        %s677 = sand.u32 %s45, 1
        %s678 = scalar_lea.sflag [#allocation25], %s677
        %s679 = sand.u32 %s325, 1
        %s680 = smul.addr %s679, 8
        %s681 = scalar_lea.vmem [#allocation24], %s680
        %p682 = pneg %p364
        %p683 = pneg %p361
        %s684 = sand.u32 %s45, 1
        %s685 = scalar_lea.sflag [#allocation25], %s684
        %s686 = sand.u32 %s351, 1
        %s687 = smul.addr %s686, 4
        %s688 = scalar_lea.vmem [#allocation26], %s687
        %p689 = pneg %p390
        %p690 = pneg %p387
        %s691 = sand.u32 %s377, 1
        %s692 = scalar_lea.sflag [#allocation28], %s691
        %s693 = sand.u32 %s377, 1
        %s694 = smul.addr %s693, 2
        %s695 = scalar_lea.vmem [#allocation27], %s694
        %v696 = vld [vmem:[%s576] sm:$0xff]
        %v697 = vld [vmem:[%s576 + $0x8] sm:$0xff]
        %v698 = vld [vmem:[#allocation8 + $0x40] sm:$0xff]
        %v699 = vld [vmem:[#allocation8 + $0x48] sm:$0xff]
        %v700 = vld [vmem:[#allocation8 + $0x50] sm:$0xff]
        %v701 = vld [vmem:[#allocation8 + $0x58] sm:$0xff]
        %v702 = vld [vmem:[#allocation8 + $0x60] sm:$0xff]
        %v703 = vld [vmem:[#allocation8 + $0x68] sm:$0xff]
        %v704 = vld [vmem:[#allocation8 + $0x70] sm:$0xff]
        %v705 = vld [vmem:[#allocation8 + $0x78] sm:$0xff]
        %v706 = vld [vmem:[#allocation8 + $0x80] sm:$0xff]
        %v707 = vld [vmem:[#allocation8 + $0x88] sm:$0xff]
        %v708 = vld [vmem:[#allocation8 + $0x90] sm:$0xff]
        %v709 = vld [vmem:[#allocation8 + $0x98] sm:$0xff]
        %v710 = vld [vmem:[#allocation8 + $0xa0] sm:$0xff]
        %v711 = vld [vmem:[#allocation8 + $0xa8] sm:$0xff]
        %v712 = vld [vmem:[#allocation8 + $0xb0] sm:$0xff]
        %v713 = vld [vmem:[#allocation8 + $0xb8] sm:$0xff]
        %v714 = vld [vmem:[#allocation8] sm:$0xff]
        %v715 = vld [vmem:[#allocation8 + $0x8] sm:$0xff]
        %v716 = vld [vmem:[#allocation8 + $0x10] sm:$0xff]
        %v717 = vld [vmem:[#allocation8 + $0x18] sm:$0xff]
        %v718 = vld [vmem:[#allocation8 + $0x20] sm:$0xff]
        %v719 = vld [vmem:[#allocation8 + $0x28] sm:$0xff]
        %v720 = vld [vmem:[#allocation8 + $0x30] sm:$0xff]
        %v721 = vld [vmem:[#allocation8 + $0x38] sm:$0xff]
        %724 = vrot.lane.b32.xlu0 %v696, 64
        %v725 = vpop.permute.xlu0 %724
        %726 = vrot.lane.b32.xlu0 %v697, 64
        %v727 = vpop.permute.xlu0 %726
        %vm728 = vcmask 523264
        %v729 = vsel %vm728, %v725, 0
        %v731 = vsel %vm728, %v727, 0
        %733 = vmatprep.subr.mxu0 0.0
        %734 = vmatpush1.msra.mxu0 %v714
        %735 = vmatprep.subr.mxu0 0.0
        %736 = vmatpush1.msra.mxu0 %v715
        %737 = vmatprep.subr.mxu0 0.0
        %738 = vmatpush1.msra.mxu0 %v716
        %739 = vmatprep.subr.mxu0 0.0
        %740 = vmatpush1.msra.mxu0 %v717
        %741 = vmatprep.subr.mxu0 0.0
        %742 = vmatpush1.msra.mxu0 %v718
        %743 = vmatprep.subr.mxu0 0.0
        %744 = vmatpush1.msra.mxu0 %v719
        %745 = vmatprep.subr.mxu0 0.0
        %746 = vmatpush1.msra.mxu0 %v720
        %747 = vmatprep.subr.mxu0 0.0
        %748 = vmatpush1.msra.mxu0 %v721
        %749 = vmatprep.subr.mxu0 0.0
        %750 = vmatpush1.msra.mxu0 0.0
        %751 = vmatprep.subr.mxu0 0.0
        %752 = vmatpush1.msra.mxu0 0.0
        %753 = vmatprep.subr.mxu0 0.0
        %754 = vmatpush1.msra.mxu0 0.0
        %755 = vmatprep.subr.mxu0 0.0
        %756 = vmatpush1.msra.mxu0 0.0
        %757 = vmatprep.subr.mxu0 0.0
        %758 = vmatpush1.msra.mxu0 0.0
        %759 = vmatprep.subr.mxu0 0.0
        %760 = vmatpush1.msra.mxu0 0.0
        %761 = vmatprep.subr.mxu0 0.0
        %762 = vmatpush1.msra.mxu0 0.0
        %763 = vmatprep.subr.mxu0 0.0
        %764 = vmatpush1.msra.mxu0 0.0
        %765 = vmatprep.subr.mxu0 0.0
        %766 = vmatpush1.msra.mxu0 0.0
        %767 = vmatprep.subr.mxu0 0.0
        %768 = vmatpush1.msra.mxu0 0.0
        %769 = vmatprep.subr.mxu0 0.0
        %770 = vmatpush1.msra.mxu0 0.0
        %771 = vmatprep.subr.mxu0 0.0
        %772 = vmatpush1.msra.mxu0 0.0
        %773 = vmatprep.subr.mxu0 0.0
        %774 = vmatpush1.msra.mxu0 0.0
        %775 = vmatprep.subr.mxu0 0.0
        %776 = vmatpush1.msra.mxu0 0.0
        %777 = vmatprep.subr.mxu0 0.0
        %778 = vmatpush1.msra.mxu0 0.0
        %779 = vmatprep.subr.mxu0 0.0
        %780 = vmatpush1.msra.mxu0 0.0
        %781 = vmatprep.subr.mxu0 0.0
        %782 = vmatpush1.msra.mxu0 0.0
        %783 = vmatprep.subr.mxu0 0.0
        %784 = vmatpush1.msra.mxu0 0.0
        %785 = vmatprep.subr.mxu0 0.0
        %786 = vmatpush1.msra.mxu0 0.0
        %787 = vmatprep.subr.mxu0 0.0
        %788 = vmatpush1.msra.mxu0 0.0
        %789 = vmatprep.subr.mxu0 0.0
        %790 = vmatpush1.msra.mxu0 0.0
        %791 = vmatprep.subr.mxu0 0.0
        %792 = vmatpush1.msra.mxu0 0.0
        %793 = vmatprep.subr.mxu0 0.0
        %794 = vmatpush1.msra.mxu0 0.0
        %795 = vmatprep.subr.mxu0 0.0
        %796 = vmatpush1.msra.mxu0 0.0
        %797 = vmatprep.mubr.f32.mxu0 0.0
        %798 = vmatmul.mubr.f32.gmra.mrb[0].mxu0 %v729
        %v799 = vpop.f32.mrb[0].mxu0
        %v800 = vadd.f32 0.0, %v799
        %v801 = vpop.f32.mrb[0].mxu0
        %802 = vmatprep.mubr.f32.mxu0 0.0
        %803 = vmatmul.mubr.f32.gmra.mrb[0].mxu0 %v731
        %v804 = vpop.f32.mrb[0].mxu0
        %v805 = vadd.f32 0.0, %v804
        %v806 = vpop.f32.mrb[0].mxu0
        %807 = vdwg.mxu0
        %vm810 = vcmask 1040384
        %v811 = vrot.slane %v800, 7
        %v812 = vrot.slane %v805, 7
        %v813 = vsel %vm810, %v811, %v812
        %v816 = vsel %vm810, 0.0, %v811
        %817 = vmatprep.subr.mxu0 0.0
        %818 = vmatpush1.msra.mxu0 %v698
        %819 = vmatprep.subr.mxu0 0.0
        %820 = vmatpush1.msra.mxu0 %v699
        %821 = vmatprep.subr.mxu0 0.0
        %822 = vmatpush1.msra.mxu0 %v700
        %823 = vmatprep.subr.mxu0 0.0
        %824 = vmatpush1.msra.mxu0 %v701
        %825 = vmatprep.subr.mxu0 0.0
        %826 = vmatpush1.msra.mxu0 %v702
        %827 = vmatprep.subr.mxu0 0.0
        %828 = vmatpush1.msra.mxu0 %v703
        %829 = vmatprep.subr.mxu0 0.0
        %830 = vmatpush1.msra.mxu0 %v704
        %831 = vmatprep.subr.mxu0 0.0
        %832 = vmatpush1.msra.mxu0 %v705
        %833 = vmatprep.subr.mxu0 0.0
        %834 = vmatpush1.msra.mxu0 %v706
        %835 = vmatprep.subr.mxu0 0.0
        %836 = vmatpush1.msra.mxu0 %v707
        %837 = vmatprep.subr.mxu0 0.0
        %838 = vmatpush1.msra.mxu0 %v708
        %839 = vmatprep.subr.mxu0 0.0
        %840 = vmatpush1.msra.mxu0 %v709
        %841 = vmatprep.subr.mxu0 0.0
        %842 = vmatpush1.msra.mxu0 %v710
        %843 = vmatprep.subr.mxu0 0.0
        %844 = vmatpush1.msra.mxu0 %v711
        %845 = vmatprep.subr.mxu0 0.0
        %846 = vmatpush1.msra.mxu0 %v712
        %847 = vmatprep.subr.mxu0 0.0
        %848 = vmatpush1.msra.mxu0 %v713
        %849 = vmatprep.subr.mxu0 0.0
        %850 = vmatpush1.msra.mxu0 0.0
        %851 = vmatprep.subr.mxu0 0.0
        %852 = vmatpush1.msra.mxu0 0.0
        %853 = vmatprep.subr.mxu0 0.0
        %854 = vmatpush1.msra.mxu0 0.0
        %855 = vmatprep.subr.mxu0 0.0
        %856 = vmatpush1.msra.mxu0 0.0
        %857 = vmatprep.subr.mxu0 0.0
        %858 = vmatpush1.msra.mxu0 0.0
        %859 = vmatprep.subr.mxu0 0.0
        %860 = vmatpush1.msra.mxu0 0.0
        %861 = vmatprep.subr.mxu0 0.0
        %862 = vmatpush1.msra.mxu0 0.0
        %863 = vmatprep.subr.mxu0 0.0
        %864 = vmatpush1.msra.mxu0 0.0
        %865 = vmatprep.subr.mxu0 0.0
        %866 = vmatpush1.msra.mxu0 0.0
        %867 = vmatprep.subr.mxu0 0.0
        %868 = vmatpush1.msra.mxu0 0.0
        %869 = vmatprep.subr.mxu0 0.0
        %870 = vmatpush1.msra.mxu0 0.0
        %871 = vmatprep.subr.mxu0 0.0
        %872 = vmatpush1.msra.mxu0 0.0
        %873 = vmatprep.subr.mxu0 0.0
        %874 = vmatpush1.msra.mxu0 0.0
        %875 = vmatprep.subr.mxu0 0.0
        %876 = vmatpush1.msra.mxu0 0.0
        %877 = vmatprep.subr.mxu0 0.0
        %878 = vmatpush1.msra.mxu0 0.0
        %879 = vmatprep.subr.mxu0 0.0
        %880 = vmatpush1.msra.mxu0 0.0
        %881 = vmatprep.mubr.f32.mxu0 0.0
        %882 = vmatmul.mubr.f32.gmra.mrb[0].mxu0 %v696
        %v883 = vpop.f32.mrb[0].mxu0
        %v884 = vadd.f32 %v816, %v883
        %v885 = vpop.f32.mrb[0].mxu0
        %886 = vmatprep.mubr.f32.mxu0 0.0
        %887 = vmatmul.mubr.f32.gmra.mrb[0].mxu0 %v697
        %v888 = vpop.f32.mrb[0].mxu0
        %v889 = vadd.f32 %v813, %v888
        %v890 = vpop.f32.mrb[0].mxu0
        %891 = vdwg.mxu0
        %v892 = vld [vmem:[#allocation10] sm:$0x1]
        %v894 = vlaneseq
        %v895 = vshrl.u32 %v894, 7
        %v896 = vsub.s32 0, %v895
        %v897 = vrot.slane %v892, %v896
        %v899 = vadd.f32 %v884, %v897
        %v900 = vadd.f32 %v889, %v897
        %v901 = vmax.f32 %v899, 0.0
        %v902 = vmax.f32 %v900, 0.0
        %v903 = vld [vmem:[%s617] sm:$0xff]
        %v904 = vld [vmem:[%s617 + $0x8] sm:$0xff]
        %v905 = vadd.f32 %v901, %v903
        %v906 = vadd.f32 %v902, %v904
        %907 = vst [vmem:[%s674] sm:$0xff] %v905
        %908 = vst [vmem:[%s674 + $0x8] sm:$0xff] %v906
        %909 = vst [vmem:[#allocation2] sm:$0xff] %v905
        %910 = vst [vmem:[#allocation2 + $0x8] sm:$0xff] %v906
        %v911 = vld [vmem:[#allocation2] ss:$2 sm:$0xff]
        %s912 = scalar_lea.vmem [#allocation2], 1
        %v913 = vld [vmem:[%s912] ss:$2 sm:$0xff]
        %v914 = vld [vmem:[#allocation11 + $0x80] sm:$0xff]
        %v915 = vld [vmem:[#allocation11 + $0x88] sm:$0xff]
        %v916 = vld [vmem:[#allocation11 + $0x90] sm:$0xff]
        %v917 = vld [vmem:[#allocation11 + $0x98] sm:$0xff]
        %v918 = vld [vmem:[#allocation11 + $0xa0] sm:$0xff]
        %v919 = vld [vmem:[#allocation11 + $0xa8] sm:$0xff]
        %v920 = vld [vmem:[#allocation11 + $0xb0] sm:$0xff]
        %v921 = vld [vmem:[#allocation11 + $0xb8] sm:$0xff]
        %v922 = vld [vmem:[#allocation11 + $0xc0] sm:$0xff]
        %v923 = vld [vmem:[#allocation11 + $0xc8] sm:$0xff]
        %v924 = vld [vmem:[#allocation11 + $0xd0] sm:$0xff]
        %v925 = vld [vmem:[#allocation11 + $0xd8] sm:$0xff]
        %v926 = vld [vmem:[#allocation11 + $0xe0] sm:$0xff]
        %v927 = vld [vmem:[#allocation11 + $0xe8] sm:$0xff]
        %v928 = vld [vmem:[#allocation11 + $0xf0] sm:$0xff]
        %v929 = vld [vmem:[#allocation11 + $0xf8] sm:$0xff]
        %v930 = vld [vmem:[#allocation11 + $0x100] sm:$0xff]
        %v931 = vld [vmem:[#allocation11 + $0x108] sm:$0xff]
        %v932 = vld [vmem:[#allocation11 + $0x110] sm:$0xff]
        %v933 = vld [vmem:[#allocation11 + $0x118] sm:$0xff]
        %v934 = vld [vmem:[#allocation11 + $0x120] sm:$0xff]
        %v935 = vld [vmem:[#allocation11 + $0x128] sm:$0xff]
        %v936 = vld [vmem:[#allocation11 + $0x130] sm:$0xff]
        %v937 = vld [vmem:[#allocation11 + $0x138] sm:$0xff]
        %v938 = vld [vmem:[#allocation11 + $0x140] sm:$0xff]
        %v939 = vld [vmem:[#allocation11 + $0x148] sm:$0xff]
        %v940 = vld [vmem:[#allocation11 + $0x150] sm:$0xff]
        %v941 = vld [vmem:[#allocation11 + $0x158] sm:$0xff]
        %v942 = vld [vmem:[#allocation11 + $0x160] sm:$0xff]
        %v943 = vld [vmem:[#allocation11 + $0x168] sm:$0xff]
        %v944 = vld [vmem:[#allocation11 + $0x170] sm:$0xff]
        %v945 = vld [vmem:[#allocation11 + $0x178] sm:$0xff]
        %946 = vmatprep.subr.mxu0 0.0
        %947 = vmatpush1.msra.mxu0 %v930
        %948 = vmatprep.subr.mxu0 0.0
        %949 = vmatpush1.msra.mxu0 %v931
        %950 = vmatprep.subr.mxu0 0.0
        %951 = vmatpush1.msra.mxu0 %v932
        %952 = vmatprep.subr.mxu0 0.0
        %953 = vmatpush1.msra.mxu0 %v933
        %954 = vmatprep.subr.mxu0 0.0
        %955 = vmatpush1.msra.mxu0 %v934
        %956 = vmatprep.subr.mxu0 0.0
        %957 = vmatpush1.msra.mxu0 %v935
        %958 = vmatprep.subr.mxu0 0.0
        %959 = vmatpush1.msra.mxu0 %v936
        %960 = vmatprep.subr.mxu0 0.0
        %961 = vmatpush1.msra.mxu0 %v937
        %962 = vmatprep.subr.mxu0 0.0
        %963 = vmatpush1.msra.mxu0 %v938
        %964 = vmatprep.subr.mxu0 0.0
        %965 = vmatpush1.msra.mxu0 %v939
        %966 = vmatprep.subr.mxu0 0.0
        %967 = vmatpush1.msra.mxu0 %v940
        %968 = vmatprep.subr.mxu0 0.0
        %969 = vmatpush1.msra.mxu0 %v941
        %970 = vmatprep.subr.mxu0 0.0
        %971 = vmatpush1.msra.mxu0 %v942
        %972 = vmatprep.subr.mxu0 0.0
        %973 = vmatpush1.msra.mxu0 %v943
        %974 = vmatprep.subr.mxu0 0.0
        %975 = vmatpush1.msra.mxu0 %v944
        %976 = vmatprep.subr.mxu0 0.0
        %977 = vmatpush1.msra.mxu0 %v945
        %978 = vmatprep.subr.mxu0 0.0
        %979 = vmatpush1.msra.mxu0 0.0
        %980 = vmatprep.subr.mxu0 0.0
        %981 = vmatpush1.msra.mxu0 0.0
        %982 = vmatprep.subr.mxu0 0.0
        %983 = vmatpush1.msra.mxu0 0.0
        %984 = vmatprep.subr.mxu0 0.0
        %985 = vmatpush1.msra.mxu0 0.0
        %986 = vmatprep.subr.mxu0 0.0
        %987 = vmatpush1.msra.mxu0 0.0
        %988 = vmatprep.subr.mxu0 0.0
        %989 = vmatpush1.msra.mxu0 0.0
        %990 = vmatprep.subr.mxu0 0.0
        %991 = vmatpush1.msra.mxu0 0.0
        %992 = vmatprep.subr.mxu0 0.0
        %993 = vmatpush1.msra.mxu0 0.0
        %994 = vmatprep.subr.mxu0 0.0
        %995 = vmatpush1.msra.mxu0 0.0
        %996 = vmatprep.subr.mxu0 0.0
        %997 = vmatpush1.msra.mxu0 0.0
        %998 = vmatprep.subr.mxu0 0.0
        %999 = vmatpush1.msra.mxu0 0.0
        %1000 = vmatprep.subr.mxu0 0.0
        %1001 = vmatpush1.msra.mxu0 0.0
        %1002 = vmatprep.subr.mxu0 0.0
        %1003 = vmatpush1.msra.mxu0 0.0
        %1004 = vmatprep.subr.mxu0 0.0
        %1005 = vmatpush1.msra.mxu0 0.0
        %1006 = vmatprep.subr.mxu0 0.0
        %1007 = vmatpush1.msra.mxu0 0.0
        %1008 = vmatprep.subr.mxu0 0.0
        %1009 = vmatpush1.msra.mxu0 0.0
        %1010 = vmatprep.mubr.f32.mxu0 0.0
        %1011 = vmatmul.mubr.f32.gmra.mrb[0].mxu0 %v913
        %v1012 = vpop.f32.mrb[0].mxu0
        %v1013 = vadd.f32 0.0, %v1012
        %v1014 = vpop.f32.mrb[0].mxu0
        %1015 = vdwg.mxu0
        %1016 = vmatprep.subr.mxu0 0.0
        %1017 = vmatpush1.msra.mxu0 %v914
        %1018 = vmatprep.subr.mxu0 0.0
        %1019 = vmatpush1.msra.mxu0 %v915
        %1020 = vmatprep.subr.mxu0 0.0
        %1021 = vmatpush1.msra.mxu0 %v916
        %1022 = vmatprep.subr.mxu0 0.0
        %1023 = vmatpush1.msra.mxu0 %v917
        %1024 = vmatprep.subr.mxu0 0.0
        %1025 = vmatpush1.msra.mxu0 %v918
        %1026 = vmatprep.subr.mxu0 0.0
        %1027 = vmatpush1.msra.mxu0 %v919
        %1028 = vmatprep.subr.mxu0 0.0
        %1029 = vmatpush1.msra.mxu0 %v920
        %1030 = vmatprep.subr.mxu0 0.0
        %1031 = vmatpush1.msra.mxu0 %v921
        %1032 = vmatprep.subr.mxu0 0.0
        %1033 = vmatpush1.msra.mxu0 %v922
        %1034 = vmatprep.subr.mxu0 0.0
        %1035 = vmatpush1.msra.mxu0 %v923
        %1036 = vmatprep.subr.mxu0 0.0
        %1037 = vmatpush1.msra.mxu0 %v924
        %1038 = vmatprep.subr.mxu0 0.0
        %1039 = vmatpush1.msra.mxu0 %v925
        %1040 = vmatprep.subr.mxu0 0.0
        %1041 = vmatpush1.msra.mxu0 %v926
        %1042 = vmatprep.subr.mxu0 0.0
        %1043 = vmatpush1.msra.mxu0 %v927
        %1044 = vmatprep.subr.mxu0 0.0
        %1045 = vmatpush1.msra.mxu0 %v928
        %1046 = vmatprep.subr.mxu0 0.0
        %1047 = vmatpush1.msra.mxu0 %v929
        %1048 = vmatprep.subr.mxu0 0.0
        %1049 = vmatpush1.msra.mxu0 0.0
        %1050 = vmatprep.subr.mxu0 0.0
        %1051 = vmatpush1.msra.mxu0 0.0
        %1052 = vmatprep.subr.mxu0 0.0
        %1053 = vmatpush1.msra.mxu0 0.0
        %1054 = vmatprep.subr.mxu0 0.0
        %1055 = vmatpush1.msra.mxu0 0.0
        %1056 = vmatprep.subr.mxu0 0.0
        %1057 = vmatpush1.msra.mxu0 0.0
        %1058 = vmatprep.subr.mxu0 0.0
        %1059 = vmatpush1.msra.mxu0 0.0
        %1060 = vmatprep.subr.mxu0 0.0
        %1061 = vmatpush1.msra.mxu0 0.0
        %1062 = vmatprep.subr.mxu0 0.0
        %1063 = vmatpush1.msra.mxu0 0.0
        %1064 = vmatprep.subr.mxu0 0.0
        %1065 = vmatpush1.msra.mxu0 0.0
        %1066 = vmatprep.subr.mxu0 0.0
        %1067 = vmatpush1.msra.mxu0 0.0
        %1068 = vmatprep.subr.mxu0 0.0
        %1069 = vmatpush1.msra.mxu0 0.0
        %1070 = vmatprep.subr.mxu0 0.0
        %1071 = vmatpush1.msra.mxu0 0.0
        %1072 = vmatprep.subr.mxu0 0.0
        %1073 = vmatpush1.msra.mxu0 0.0
        %1074 = vmatprep.subr.mxu0 0.0
        %1075 = vmatpush1.msra.mxu0 0.0
        %1076 = vmatprep.subr.mxu0 0.0
        %1077 = vmatpush1.msra.mxu0 0.0
        %1078 = vmatprep.subr.mxu0 0.0
        %1079 = vmatpush1.msra.mxu0 0.0
        %1080 = vmatprep.mubr.f32.mxu0 0.0
        %1081 = vmatmul.mubr.f32.gmra.mrb[0].mxu0 %v911
        %v1082 = vpop.f32.mrb[0].mxu0
        %v1083 = vadd.f32 %v1013, %v1082
        %v1084 = vpop.f32.mrb[0].mxu0
        %1085 = vdwg.mxu0
        %v1086 = vld [vmem:[#allocation11] sm:$0xff]
        %v1087 = vld [vmem:[#allocation11 + $0x8] sm:$0xff]
        %v1088 = vld [vmem:[#allocation11 + $0x10] sm:$0xff]
        %v1089 = vld [vmem:[#allocation11 + $0x18] sm:$0xff]
        %v1090 = vld [vmem:[#allocation11 + $0x20] sm:$0xff]
        %v1091 = vld [vmem:[#allocation11 + $0x28] sm:$0xff]
        %v1092 = vld [vmem:[#allocation11 + $0x30] sm:$0xff]
        %v1093 = vld [vmem:[#allocation11 + $0x38] sm:$0xff]
        %v1094 = vld [vmem:[#allocation11 + $0x40] sm:$0xff]
        %v1095 = vld [vmem:[#allocation11 + $0x48] sm:$0xff]
        %v1096 = vld [vmem:[#allocation11 + $0x50] sm:$0xff]
        %v1097 = vld [vmem:[#allocation11 + $0x58] sm:$0xff]
        %v1098 = vld [vmem:[#allocation11 + $0x60] sm:$0xff]
        %v1099 = vld [vmem:[#allocation11 + $0x68] sm:$0xff]
        %v1100 = vld [vmem:[#allocation11 + $0x70] sm:$0xff]
        %v1101 = vld [vmem:[#allocation11 + $0x78] sm:$0xff]
        %1102 = vmatprep.subr.mxu0 0.0
        %1103 = vmatpush1.msra.mxu0 %v1086
        %1104 = vmatprep.subr.mxu0 0.0
        %1105 = vmatpush1.msra.mxu0 %v1087
        %1106 = vmatprep.subr.mxu0 0.0
        %1107 = vmatpush1.msra.mxu0 %v1088
        %1108 = vmatprep.subr.mxu0 0.0
        %1109 = vmatpush1.msra.mxu0 %v1089
        %1110 = vmatprep.subr.mxu0 0.0
        %1111 = vmatpush1.msra.mxu0 %v1090
        %1112 = vmatprep.subr.mxu0 0.0
        %1113 = vmatpush1.msra.mxu0 %v1091
        %1114 = vmatprep.subr.mxu0 0.0
        %1115 = vmatpush1.msra.mxu0 %v1092
        %1116 = vmatprep.subr.mxu0 0.0
        %1117 = vmatpush1.msra.mxu0 %v1093
        %1118 = vmatprep.subr.mxu0 0.0
        %1119 = vmatpush1.msra.mxu0 %v1094
        %1120 = vmatprep.subr.mxu0 0.0
        %1121 = vmatpush1.msra.mxu0 %v1095
        %1122 = vmatprep.subr.mxu0 0.0
        %1123 = vmatpush1.msra.mxu0 %v1096
        %1124 = vmatprep.subr.mxu0 0.0
        %1125 = vmatpush1.msra.mxu0 %v1097
        %1126 = vmatprep.subr.mxu0 0.0
        %1127 = vmatpush1.msra.mxu0 %v1098
        %1128 = vmatprep.subr.mxu0 0.0
        %1129 = vmatpush1.msra.mxu0 %v1099
        %1130 = vmatprep.subr.mxu0 0.0
        %1131 = vmatpush1.msra.mxu0 %v1100
        %1132 = vmatprep.subr.mxu0 0.0
        %1133 = vmatpush1.msra.mxu0 %v1101
        %1134 = vmatprep.subr.mxu0 0.0
        %1135 = vmatpush1.msra.mxu0 0.0
        %1136 = vmatprep.subr.mxu0 0.0
        %1137 = vmatpush1.msra.mxu0 0.0
        %1138 = vmatprep.subr.mxu0 0.0
        %1139 = vmatpush1.msra.mxu0 0.0
        %1140 = vmatprep.subr.mxu0 0.0
        %1141 = vmatpush1.msra.mxu0 0.0
        %1142 = vmatprep.subr.mxu0 0.0
        %1143 = vmatpush1.msra.mxu0 0.0
        %1144 = vmatprep.subr.mxu0 0.0
        %1145 = vmatpush1.msra.mxu0 0.0
        %1146 = vmatprep.subr.mxu0 0.0
        %1147 = vmatpush1.msra.mxu0 0.0
        %1148 = vmatprep.subr.mxu0 0.0
        %1149 = vmatpush1.msra.mxu0 0.0
        %1150 = vmatprep.subr.mxu0 0.0
        %1151 = vmatpush1.msra.mxu0 0.0
        %1152 = vmatprep.subr.mxu0 0.0
        %1153 = vmatpush1.msra.mxu0 0.0
        %1154 = vmatprep.subr.mxu0 0.0
        %1155 = vmatpush1.msra.mxu0 0.0
        %1156 = vmatprep.subr.mxu0 0.0
        %1157 = vmatpush1.msra.mxu0 0.0
        %1158 = vmatprep.subr.mxu0 0.0
        %1159 = vmatpush1.msra.mxu0 0.0
        %1160 = vmatprep.subr.mxu0 0.0
        %1161 = vmatpush1.msra.mxu0 0.0
        %1162 = vmatprep.subr.mxu0 0.0
        %1163 = vmatpush1.msra.mxu0 0.0
        %1164 = vmatprep.subr.mxu0 0.0
        %1165 = vmatpush1.msra.mxu0 0.0
        %1166 = vmatprep.mubr.f32.mxu0 0.0
        %1167 = vmatmul.mubr.f32.gmra.mrb[0].mxu0 %v913
        %v1168 = vpop.f32.mrb[0].mxu0
        %v1169 = vadd.f32 0.0, %v1168
        %v1170 = vpop.f32.mrb[0].mxu0
        %1171 = vdwg.mxu0
        %v1173 = vrot.slane %v1169, 7
        %v1175 = vsel %vm810, 0.0, %v1173
        %v1176 = vadd.f32 %v1083, %v1175
        %v1177 = vld [vmem:[#allocation13] sm:$0x1]
        %v1179 = vlaneseq
        %v1180 = vshrl.u32 %v1179, 7
        %v1181 = vsub.s32 0, %v1180
        %v1182 = vrot.slane %v1177, %v1181
        %v1184 = vadd.f32 %v1176, %v1182
        %v1185 = vmax.f32 %v1184, 0.0
        %v1186 = vld [vmem:[%s626] sm:$0xff]
        %v1187 = vadd.f32 %v1185, %v1186
        %1188 = vst [vmem:[%s681] sm:$0xff] %v1187
        %1189 = vst [vmem:[#allocation3] sm:$0xff] %v1187
        %v1190 = vld [vmem:[#allocation3] ss:$2 sm:$0xf]
        %s1191 = scalar_lea.vmem [#allocation3], 1
        %v1192 = vld [vmem:[%s1191] ss:$2 sm:$0xf]
        %v1193 = vld [vmem:[#allocation14 + $0x80] sm:$0xff]
        %v1194 = vld [vmem:[#allocation14 + $0x88] sm:$0xff]
        %v1195 = vld [vmem:[#allocation14 + $0x90] sm:$0xff]
        %v1196 = vld [vmem:[#allocation14 + $0x98] sm:$0xff]
        %v1197 = vld [vmem:[#allocation14 + $0xa0] sm:$0xff]
        %v1198 = vld [vmem:[#allocation14 + $0xa8] sm:$0xff]
        %v1199 = vld [vmem:[#allocation14 + $0xb0] sm:$0xff]
        %v1200 = vld [vmem:[#allocation14 + $0xb8] sm:$0xff]
        %v1201 = vld [vmem:[#allocation14 + $0xc0] sm:$0xff]
        %v1202 = vld [vmem:[#allocation14 + $0xc8] sm:$0xff]
        %v1203 = vld [vmem:[#allocation14 + $0xd0] sm:$0xff]
        %v1204 = vld [vmem:[#allocation14 + $0xd8] sm:$0xff]
        %v1205 = vld [vmem:[#allocation14 + $0xe0] sm:$0xff]
        %v1206 = vld [vmem:[#allocation14 + $0xe8] sm:$0xff]
        %v1207 = vld [vmem:[#allocation14 + $0xf0] sm:$0xff]
        %v1208 = vld [vmem:[#allocation14 + $0xf8] sm:$0xff]
        %v1209 = vld [vmem:[#allocation14 + $0x100] sm:$0xff]
        %v1210 = vld [vmem:[#allocation14 + $0x108] sm:$0xff]
        %v1211 = vld [vmem:[#allocation14 + $0x110] sm:$0xff]
        %v1212 = vld [vmem:[#allocation14 + $0x118] sm:$0xff]
        %v1213 = vld [vmem:[#allocation14 + $0x120] sm:$0xff]
        %v1214 = vld [vmem:[#allocation14 + $0x128] sm:$0xff]
        %v1215 = vld [vmem:[#allocation14 + $0x130] sm:$0xff]
        %v1216 = vld [vmem:[#allocation14 + $0x138] sm:$0xff]
        %v1217 = vld [vmem:[#allocation14 + $0x140] sm:$0xff]
        %v1218 = vld [vmem:[#allocation14 + $0x148] sm:$0xff]
        %v1219 = vld [vmem:[#allocation14 + $0x150] sm:$0xff]
        %v1220 = vld [vmem:[#allocation14 + $0x158] sm:$0xff]
        %v1221 = vld [vmem:[#allocation14 + $0x160] sm:$0xff]
        %v1222 = vld [vmem:[#allocation14 + $0x168] sm:$0xff]
        %v1223 = vld [vmem:[#allocation14 + $0x170] sm:$0xff]
        %v1224 = vld [vmem:[#allocation14 + $0x178] sm:$0xff]
        %1225 = vmatprep.subr.mxu0 0.0
        %1226 = vmatpush1.msra.mxu0 %v1209
        %1227 = vmatprep.subr.mxu0 0.0
        %1228 = vmatpush1.msra.mxu0 %v1210
        %1229 = vmatprep.subr.mxu0 0.0
        %1230 = vmatpush1.msra.mxu0 %v1211
        %1231 = vmatprep.subr.mxu0 0.0
        %1232 = vmatpush1.msra.mxu0 %v1212
        %1233 = vmatprep.subr.mxu0 0.0
        %1234 = vmatpush1.msra.mxu0 %v1213
        %1235 = vmatprep.subr.mxu0 0.0
        %1236 = vmatpush1.msra.mxu0 %v1214
        %1237 = vmatprep.subr.mxu0 0.0
        %1238 = vmatpush1.msra.mxu0 %v1215
        %1239 = vmatprep.subr.mxu0 0.0
        %1240 = vmatpush1.msra.mxu0 %v1216
        %1241 = vmatprep.subr.mxu0 0.0
        %1242 = vmatpush1.msra.mxu0 %v1217
        %1243 = vmatprep.subr.mxu0 0.0
        %1244 = vmatpush1.msra.mxu0 %v1218
        %1245 = vmatprep.subr.mxu0 0.0
        %1246 = vmatpush1.msra.mxu0 %v1219
        %1247 = vmatprep.subr.mxu0 0.0
        %1248 = vmatpush1.msra.mxu0 %v1220
        %1249 = vmatprep.subr.mxu0 0.0
        %1250 = vmatpush1.msra.mxu0 %v1221
        %1251 = vmatprep.subr.mxu0 0.0
        %1252 = vmatpush1.msra.mxu0 %v1222
        %1253 = vmatprep.subr.mxu0 0.0
        %1254 = vmatpush1.msra.mxu0 %v1223
        %1255 = vmatprep.subr.mxu0 0.0
        %1256 = vmatpush1.msra.mxu0 %v1224
        %1257 = vmatprep.subr.mxu0 0.0
        %1258 = vmatpush1.msra.mxu0 0.0
        %1259 = vmatprep.subr.mxu0 0.0
        %1260 = vmatpush1.msra.mxu0 0.0
        %1261 = vmatprep.subr.mxu0 0.0
        %1262 = vmatpush1.msra.mxu0 0.0
        %1263 = vmatprep.subr.mxu0 0.0
        %1264 = vmatpush1.msra.mxu0 0.0
        %1265 = vmatprep.subr.mxu0 0.0
        %1266 = vmatpush1.msra.mxu0 0.0
        %1267 = vmatprep.subr.mxu0 0.0
        %1268 = vmatpush1.msra.mxu0 0.0
        %1269 = vmatprep.subr.mxu0 0.0
        %1270 = vmatpush1.msra.mxu0 0.0
        %1271 = vmatprep.subr.mxu0 0.0
        %1272 = vmatpush1.msra.mxu0 0.0
        %1273 = vmatprep.subr.mxu0 0.0
        %1274 = vmatpush1.msra.mxu0 0.0
        %1275 = vmatprep.subr.mxu0 0.0
        %1276 = vmatpush1.msra.mxu0 0.0
        %1277 = vmatprep.subr.mxu0 0.0
        %1278 = vmatpush1.msra.mxu0 0.0
        %1279 = vmatprep.subr.mxu0 0.0
        %1280 = vmatpush1.msra.mxu0 0.0
        %1281 = vmatprep.subr.mxu0 0.0
        %1282 = vmatpush1.msra.mxu0 0.0
        %1283 = vmatprep.subr.mxu0 0.0
        %1284 = vmatpush1.msra.mxu0 0.0
        %1285 = vmatprep.subr.mxu0 0.0
        %1286 = vmatpush1.msra.mxu0 0.0
        %1287 = vmatprep.subr.mxu0 0.0
        %1288 = vmatpush1.msra.mxu0 0.0
        %1289 = vmatprep.mubr.f32.mxu0 0.0
        %1290 = vmatmul.mubr.f32.gmra.mrb[0].mxu0 %v1192
        %v1291 = vpop.f32.mrb[0].mxu0
        %v1292 = vadd.f32 0.0, %v1291
        %v1293 = vpop.f32.mrb[0].mxu0
        %1294 = vdwg.mxu0
        %1295 = vmatprep.subr.mxu0 0.0
        %1296 = vmatpush1.msra.mxu0 %v1193
        %1297 = vmatprep.subr.mxu0 0.0
        %1298 = vmatpush1.msra.mxu0 %v1194
        %1299 = vmatprep.subr.mxu0 0.0
        %1300 = vmatpush1.msra.mxu0 %v1195
        %1301 = vmatprep.subr.mxu0 0.0
        %1302 = vmatpush1.msra.mxu0 %v1196
        %1303 = vmatprep.subr.mxu0 0.0
        %1304 = vmatpush1.msra.mxu0 %v1197
        %1305 = vmatprep.subr.mxu0 0.0
        %1306 = vmatpush1.msra.mxu0 %v1198
        %1307 = vmatprep.subr.mxu0 0.0
        %1308 = vmatpush1.msra.mxu0 %v1199
        %1309 = vmatprep.subr.mxu0 0.0
        %1310 = vmatpush1.msra.mxu0 %v1200
        %1311 = vmatprep.subr.mxu0 0.0
        %1312 = vmatpush1.msra.mxu0 %v1201
        %1313 = vmatprep.subr.mxu0 0.0
        %1314 = vmatpush1.msra.mxu0 %v1202
        %1315 = vmatprep.subr.mxu0 0.0
        %1316 = vmatpush1.msra.mxu0 %v1203
        %1317 = vmatprep.subr.mxu0 0.0
        %1318 = vmatpush1.msra.mxu0 %v1204
        %1319 = vmatprep.subr.mxu0 0.0
        %1320 = vmatpush1.msra.mxu0 %v1205
        %1321 = vmatprep.subr.mxu0 0.0
        %1322 = vmatpush1.msra.mxu0 %v1206
        %1323 = vmatprep.subr.mxu0 0.0
        %1324 = vmatpush1.msra.mxu0 %v1207
        %1325 = vmatprep.subr.mxu0 0.0
        %1326 = vmatpush1.msra.mxu0 %v1208
        %1327 = vmatprep.subr.mxu0 0.0
        %1328 = vmatpush1.msra.mxu0 0.0
        %1329 = vmatprep.subr.mxu0 0.0
        %1330 = vmatpush1.msra.mxu0 0.0
        %1331 = vmatprep.subr.mxu0 0.0
        %1332 = vmatpush1.msra.mxu0 0.0
        %1333 = vmatprep.subr.mxu0 0.0
        %1334 = vmatpush1.msra.mxu0 0.0
        %1335 = vmatprep.subr.mxu0 0.0
        %1336 = vmatpush1.msra.mxu0 0.0
        %1337 = vmatprep.subr.mxu0 0.0
        %1338 = vmatpush1.msra.mxu0 0.0
        %1339 = vmatprep.subr.mxu0 0.0
        %1340 = vmatpush1.msra.mxu0 0.0
        %1341 = vmatprep.subr.mxu0 0.0
        %1342 = vmatpush1.msra.mxu0 0.0
        %1343 = vmatprep.subr.mxu0 0.0
        %1344 = vmatpush1.msra.mxu0 0.0
        %1345 = vmatprep.subr.mxu0 0.0
        %1346 = vmatpush1.msra.mxu0 0.0
        %1347 = vmatprep.subr.mxu0 0.0
        %1348 = vmatpush1.msra.mxu0 0.0
        %1349 = vmatprep.subr.mxu0 0.0
        %1350 = vmatpush1.msra.mxu0 0.0
        %1351 = vmatprep.subr.mxu0 0.0
        %1352 = vmatpush1.msra.mxu0 0.0
        %1353 = vmatprep.subr.mxu0 0.0
        %1354 = vmatpush1.msra.mxu0 0.0
        %1355 = vmatprep.subr.mxu0 0.0
        %1356 = vmatpush1.msra.mxu0 0.0
        %1357 = vmatprep.subr.mxu0 0.0
        %1358 = vmatpush1.msra.mxu0 0.0
        %1359 = vmatprep.mubr.f32.mxu0 0.0
        %1360 = vmatmul.mubr.f32.gmra.mrb[0].mxu0 %v1190
        %v1361 = vpop.f32.mrb[0].mxu0
        %v1362 = vadd.f32 %v1292, %v1361
        %v1363 = vpop.f32.mrb[0].mxu0
        %1364 = vdwg.mxu0
        %v1365 = vld [vmem:[#allocation14] sm:$0xff]
        %v1366 = vld [vmem:[#allocation14 + $0x8] sm:$0xff]
        %v1367 = vld [vmem:[#allocation14 + $0x10] sm:$0xff]
        %v1368 = vld [vmem:[#allocation14 + $0x18] sm:$0xff]
        %v1369 = vld [vmem:[#allocation14 + $0x20] sm:$0xff]
        %v1370 = vld [vmem:[#allocation14 + $0x28] sm:$0xff]
        %v1371 = vld [vmem:[#allocation14 + $0x30] sm:$0xff]
        %v1372 = vld [vmem:[#allocation14 + $0x38] sm:$0xff]
        %v1373 = vld [vmem:[#allocation14 + $0x40] sm:$0xff]
        %v1374 = vld [vmem:[#allocation14 + $0x48] sm:$0xff]
        %v1375 = vld [vmem:[#allocation14 + $0x50] sm:$0xff]
        %v1376 = vld [vmem:[#allocation14 + $0x58] sm:$0xff]
        %v1377 = vld [vmem:[#allocation14 + $0x60] sm:$0xff]
        %v1378 = vld [vmem:[#allocation14 + $0x68] sm:$0xff]
        %v1379 = vld [vmem:[#allocation14 + $0x70] sm:$0xff]
        %v1380 = vld [vmem:[#allocation14 + $0x78] sm:$0xff]
        %1381 = vmatprep.subr.mxu0 0.0
        %1382 = vmatpush1.msra.mxu0 %v1365
        %1383 = vmatprep.subr.mxu0 0.0
        %1384 = vmatpush1.msra.mxu0 %v1366
        %1385 = vmatprep.subr.mxu0 0.0
        %1386 = vmatpush1.msra.mxu0 %v1367
        %1387 = vmatprep.subr.mxu0 0.0
        %1388 = vmatpush1.msra.mxu0 %v1368
        %1389 = vmatprep.subr.mxu0 0.0
        %1390 = vmatpush1.msra.mxu0 %v1369
        %1391 = vmatprep.subr.mxu0 0.0
        %1392 = vmatpush1.msra.mxu0 %v1370
        %1393 = vmatprep.subr.mxu0 0.0
        %1394 = vmatpush1.msra.mxu0 %v1371
        %1395 = vmatprep.subr.mxu0 0.0
        %1396 = vmatpush1.msra.mxu0 %v1372
        %1397 = vmatprep.subr.mxu0 0.0
        %1398 = vmatpush1.msra.mxu0 %v1373
        %1399 = vmatprep.subr.mxu0 0.0
        %1400 = vmatpush1.msra.mxu0 %v1374
        %1401 = vmatprep.subr.mxu0 0.0
        %1402 = vmatpush1.msra.mxu0 %v1375
        %1403 = vmatprep.subr.mxu0 0.0
        %1404 = vmatpush1.msra.mxu0 %v1376
        %1405 = vmatprep.subr.mxu0 0.0
        %1406 = vmatpush1.msra.mxu0 %v1377
        %1407 = vmatprep.subr.mxu0 0.0
        %1408 = vmatpush1.msra.mxu0 %v1378
        %1409 = vmatprep.subr.mxu0 0.0
        %1410 = vmatpush1.msra.mxu0 %v1379
        %1411 = vmatprep.subr.mxu0 0.0
        %1412 = vmatpush1.msra.mxu0 %v1380
        %1413 = vmatprep.subr.mxu0 0.0
        %1414 = vmatpush1.msra.mxu0 0.0
        %1415 = vmatprep.subr.mxu0 0.0
        %1416 = vmatpush1.msra.mxu0 0.0
        %1417 = vmatprep.subr.mxu0 0.0
        %1418 = vmatpush1.msra.mxu0 0.0
        %1419 = vmatprep.subr.mxu0 0.0
        %1420 = vmatpush1.msra.mxu0 0.0
        %1421 = vmatprep.subr.mxu0 0.0
        %1422 = vmatpush1.msra.mxu0 0.0
        %1423 = vmatprep.subr.mxu0 0.0
        %1424 = vmatpush1.msra.mxu0 0.0
        %1425 = vmatprep.subr.mxu0 0.0
        %1426 = vmatpush1.msra.mxu0 0.0
        %1427 = vmatprep.subr.mxu0 0.0
        %1428 = vmatpush1.msra.mxu0 0.0
        %1429 = vmatprep.subr.mxu0 0.0
        %1430 = vmatpush1.msra.mxu0 0.0
        %1431 = vmatprep.subr.mxu0 0.0
        %1432 = vmatpush1.msra.mxu0 0.0
        %1433 = vmatprep.subr.mxu0 0.0
        %1434 = vmatpush1.msra.mxu0 0.0
        %1435 = vmatprep.subr.mxu0 0.0
        %1436 = vmatpush1.msra.mxu0 0.0
        %1437 = vmatprep.subr.mxu0 0.0
        %1438 = vmatpush1.msra.mxu0 0.0
        %1439 = vmatprep.subr.mxu0 0.0
        %1440 = vmatpush1.msra.mxu0 0.0
        %1441 = vmatprep.subr.mxu0 0.0
        %1442 = vmatpush1.msra.mxu0 0.0
        %1443 = vmatprep.subr.mxu0 0.0
        %1444 = vmatpush1.msra.mxu0 0.0
        %1445 = vmatprep.mubr.f32.mxu0 0.0
        %1446 = vmatmul.mubr.f32.gmra.mrb[0].mxu0 %v1192
        %v1447 = vpop.f32.mrb[0].mxu0
        %v1448 = vadd.f32 0.0, %v1447
        %v1449 = vpop.f32.mrb[0].mxu0
        %1450 = vdwg.mxu0
        %v1452 = vrot.slane %v1448, 7
        %v1454 = vsel %vm810, 0.0, %v1452
        %v1455 = vadd.f32 %v1362, %v1454
        %v1456 = vld [vmem:[#allocation16] sm:$0x1]
        %v1458 = vlaneseq
        %v1459 = vshrl.u32 %v1458, 7
        %v1460 = vsub.s32 0, %v1459
        %v1461 = vrot.slane %v1456, %v1460
        %v1463 = vadd.f32 %v1455, %v1461
        %v1464 = vmax.f32 %v1463, 0.0
        %1465 = vst [vmem:[%s688] sm:$0xf] %v1464
        %1466 = vst [vmem:[#allocation4] sm:$0xf] %v1464
        %v1467 = vld [vmem:[#allocation4] ss:$2 sm:$0x3]
        %s1468 = scalar_lea.vmem [#allocation4], 1
        %v1469 = vld [vmem:[%s1468] ss:$2 sm:$0x3]
        %v1470 = vld [vmem:[#allocation17 + $0x80] sm:$0xff]
        %v1471 = vld [vmem:[#allocation17 + $0x88] sm:$0xff]
        %v1472 = vld [vmem:[#allocation17 + $0x90] sm:$0xff]
        %v1473 = vld [vmem:[#allocation17 + $0x98] sm:$0xff]
        %v1474 = vld [vmem:[#allocation17 + $0xa0] sm:$0xff]
        %v1475 = vld [vmem:[#allocation17 + $0xa8] sm:$0xff]
        %v1476 = vld [vmem:[#allocation17 + $0xb0] sm:$0xff]
        %v1477 = vld [vmem:[#allocation17 + $0xb8] sm:$0xff]
        %v1478 = vld [vmem:[#allocation17 + $0xc0] sm:$0xff]
        %v1479 = vld [vmem:[#allocation17 + $0xc8] sm:$0xff]
        %v1480 = vld [vmem:[#allocation17 + $0xd0] sm:$0xff]
        %v1481 = vld [vmem:[#allocation17 + $0xd8] sm:$0xff]
        %v1482 = vld [vmem:[#allocation17 + $0xe0] sm:$0xff]
        %v1483 = vld [vmem:[#allocation17 + $0xe8] sm:$0xff]
        %v1484 = vld [vmem:[#allocation17 + $0xf0] sm:$0xff]
        %v1485 = vld [vmem:[#allocation17 + $0xf8] sm:$0xff]
        %v1486 = vld [vmem:[#allocation17 + $0x100] sm:$0xff]
        %v1487 = vld [vmem:[#allocation17 + $0x108] sm:$0xff]
        %v1488 = vld [vmem:[#allocation17 + $0x110] sm:$0xff]
        %v1489 = vld [vmem:[#allocation17 + $0x118] sm:$0xff]
        %v1490 = vld [vmem:[#allocation17 + $0x120] sm:$0xff]
        %v1491 = vld [vmem:[#allocation17 + $0x128] sm:$0xff]
        %v1492 = vld [vmem:[#allocation17 + $0x130] sm:$0xff]
        %v1493 = vld [vmem:[#allocation17 + $0x138] sm:$0xff]
        %v1494 = vld [vmem:[#allocation17 + $0x140] sm:$0xff]
        %v1495 = vld [vmem:[#allocation17 + $0x148] sm:$0xff]
        %v1496 = vld [vmem:[#allocation17 + $0x150] sm:$0xff]
        %v1497 = vld [vmem:[#allocation17 + $0x158] sm:$0xff]
        %v1498 = vld [vmem:[#allocation17 + $0x160] sm:$0xff]
        %v1499 = vld [vmem:[#allocation17 + $0x168] sm:$0xff]
        %v1500 = vld [vmem:[#allocation17 + $0x170] sm:$0xff]
        %v1501 = vld [vmem:[#allocation17 + $0x178] sm:$0xff]
        %1502 = vmatprep.subr.mxu0 0.0
        %1503 = vmatpush1.msra.mxu0 %v1486
        %1504 = vmatprep.subr.mxu0 0.0
        %1505 = vmatpush1.msra.mxu0 %v1487
        %1506 = vmatprep.subr.mxu0 0.0
        %1507 = vmatpush1.msra.mxu0 %v1488
        %1508 = vmatprep.subr.mxu0 0.0
        %1509 = vmatpush1.msra.mxu0 %v1489
        %1510 = vmatprep.subr.mxu0 0.0
        %1511 = vmatpush1.msra.mxu0 %v1490
        %1512 = vmatprep.subr.mxu0 0.0
        %1513 = vmatpush1.msra.mxu0 %v1491
        %1514 = vmatprep.subr.mxu0 0.0
        %1515 = vmatpush1.msra.mxu0 %v1492
        %1516 = vmatprep.subr.mxu0 0.0
        %1517 = vmatpush1.msra.mxu0 %v1493
        %1518 = vmatprep.subr.mxu0 0.0
        %1519 = vmatpush1.msra.mxu0 %v1494
        %1520 = vmatprep.subr.mxu0 0.0
        %1521 = vmatpush1.msra.mxu0 %v1495
        %1522 = vmatprep.subr.mxu0 0.0
        %1523 = vmatpush1.msra.mxu0 %v1496
        %1524 = vmatprep.subr.mxu0 0.0
        %1525 = vmatpush1.msra.mxu0 %v1497
        %1526 = vmatprep.subr.mxu0 0.0
        %1527 = vmatpush1.msra.mxu0 %v1498
        %1528 = vmatprep.subr.mxu0 0.0
        %1529 = vmatpush1.msra.mxu0 %v1499
        %1530 = vmatprep.subr.mxu0 0.0
        %1531 = vmatpush1.msra.mxu0 %v1500
        %1532 = vmatprep.subr.mxu0 0.0
        %1533 = vmatpush1.msra.mxu0 %v1501
        %1534 = vmatprep.subr.mxu0 0.0
        %1535 = vmatpush1.msra.mxu0 0.0
        %1536 = vmatprep.subr.mxu0 0.0
        %1537 = vmatpush1.msra.mxu0 0.0
        %1538 = vmatprep.subr.mxu0 0.0
        %1539 = vmatpush1.msra.mxu0 0.0
        %1540 = vmatprep.subr.mxu0 0.0
        %1541 = vmatpush1.msra.mxu0 0.0
        %1542 = vmatprep.subr.mxu0 0.0
        %1543 = vmatpush1.msra.mxu0 0.0
        %1544 = vmatprep.subr.mxu0 0.0
        %1545 = vmatpush1.msra.mxu0 0.0
        %1546 = vmatprep.subr.mxu0 0.0
        %1547 = vmatpush1.msra.mxu0 0.0
        %1548 = vmatprep.subr.mxu0 0.0
        %1549 = vmatpush1.msra.mxu0 0.0
        %1550 = vmatprep.subr.mxu0 0.0
        %1551 = vmatpush1.msra.mxu0 0.0
        %1552 = vmatprep.subr.mxu0 0.0
        %1553 = vmatpush1.msra.mxu0 0.0
        %1554 = vmatprep.subr.mxu0 0.0
        %1555 = vmatpush1.msra.mxu0 0.0
        %1556 = vmatprep.subr.mxu0 0.0
        %1557 = vmatpush1.msra.mxu0 0.0
        %1558 = vmatprep.subr.mxu0 0.0
        %1559 = vmatpush1.msra.mxu0 0.0
        %1560 = vmatprep.subr.mxu0 0.0
        %1561 = vmatpush1.msra.mxu0 0.0
        %1562 = vmatprep.subr.mxu0 0.0
        %1563 = vmatpush1.msra.mxu0 0.0
        %1564 = vmatprep.subr.mxu0 0.0
        %1565 = vmatpush1.msra.mxu0 0.0
        %1566 = vmatprep.mubr.f32.mxu0 0.0
        %1567 = vmatmul.mubr.f32.gmra.mrb[0].mxu0 %v1469
        %v1568 = vpop.f32.mrb[0].mxu0
        %v1569 = vadd.f32 0.0, %v1568
        %v1570 = vpop.f32.mrb[0].mxu0
        %1571 = vdwg.mxu0
        %1572 = vmatprep.subr.mxu0 0.0
        %1573 = vmatpush1.msra.mxu0 %v1470
        %1574 = vmatprep.subr.mxu0 0.0
        %1575 = vmatpush1.msra.mxu0 %v1471
        %1576 = vmatprep.subr.mxu0 0.0
        %1577 = vmatpush1.msra.mxu0 %v1472
        %1578 = vmatprep.subr.mxu0 0.0
        %1579 = vmatpush1.msra.mxu0 %v1473
        %1580 = vmatprep.subr.mxu0 0.0
        %1581 = vmatpush1.msra.mxu0 %v1474
        %1582 = vmatprep.subr.mxu0 0.0
        %1583 = vmatpush1.msra.mxu0 %v1475
        %1584 = vmatprep.subr.mxu0 0.0
        %1585 = vmatpush1.msra.mxu0 %v1476
        %1586 = vmatprep.subr.mxu0 0.0
        %1587 = vmatpush1.msra.mxu0 %v1477
        %1588 = vmatprep.subr.mxu0 0.0
        %1589 = vmatpush1.msra.mxu0 %v1478
        %1590 = vmatprep.subr.mxu0 0.0
        %1591 = vmatpush1.msra.mxu0 %v1479
        %1592 = vmatprep.subr.mxu0 0.0
        %1593 = vmatpush1.msra.mxu0 %v1480
        %1594 = vmatprep.subr.mxu0 0.0
        %1595 = vmatpush1.msra.mxu0 %v1481
        %1596 = vmatprep.subr.mxu0 0.0
        %1597 = vmatpush1.msra.mxu0 %v1482
        %1598 = vmatprep.subr.mxu0 0.0
        %1599 = vmatpush1.msra.mxu0 %v1483
        %1600 = vmatprep.subr.mxu0 0.0
        %1601 = vmatpush1.msra.mxu0 %v1484
        %1602 = vmatprep.subr.mxu0 0.0
        %1603 = vmatpush1.msra.mxu0 %v1485
        %1604 = vmatprep.subr.mxu0 0.0
        %1605 = vmatpush1.msra.mxu0 0.0
        %1606 = vmatprep.subr.mxu0 0.0
        %1607 = vmatpush1.msra.mxu0 0.0
        %1608 = vmatprep.subr.mxu0 0.0
        %1609 = vmatpush1.msra.mxu0 0.0
        %1610 = vmatprep.subr.mxu0 0.0
        %1611 = vmatpush1.msra.mxu0 0.0
        %1612 = vmatprep.subr.mxu0 0.0
        %1613 = vmatpush1.msra.mxu0 0.0
        %1614 = vmatprep.subr.mxu0 0.0
        %1615 = vmatpush1.msra.mxu0 0.0
        %1616 = vmatprep.subr.mxu0 0.0
        %1617 = vmatpush1.msra.mxu0 0.0
        %1618 = vmatprep.subr.mxu0 0.0
        %1619 = vmatpush1.msra.mxu0 0.0
        %1620 = vmatprep.subr.mxu0 0.0
        %1621 = vmatpush1.msra.mxu0 0.0
        %1622 = vmatprep.subr.mxu0 0.0
        %1623 = vmatpush1.msra.mxu0 0.0
        %1624 = vmatprep.subr.mxu0 0.0
        %1625 = vmatpush1.msra.mxu0 0.0
        %1626 = vmatprep.subr.mxu0 0.0
        %1627 = vmatpush1.msra.mxu0 0.0
        %1628 = vmatprep.subr.mxu0 0.0
        %1629 = vmatpush1.msra.mxu0 0.0
        %1630 = vmatprep.subr.mxu0 0.0
        %1631 = vmatpush1.msra.mxu0 0.0
        %1632 = vmatprep.subr.mxu0 0.0
        %1633 = vmatpush1.msra.mxu0 0.0
        %1634 = vmatprep.subr.mxu0 0.0
        %1635 = vmatpush1.msra.mxu0 0.0
        %1636 = vmatprep.mubr.f32.mxu0 0.0
        %1637 = vmatmul.mubr.f32.gmra.mrb[0].mxu0 %v1467
        %v1638 = vpop.f32.mrb[0].mxu0
        %v1639 = vadd.f32 %v1569, %v1638
        %v1640 = vpop.f32.mrb[0].mxu0
        %1641 = vdwg.mxu0
        %v1642 = vld [vmem:[#allocation17] sm:$0xff]
        %v1643 = vld [vmem:[#allocation17 + $0x8] sm:$0xff]
        %v1644 = vld [vmem:[#allocation17 + $0x10] sm:$0xff]
        %v1645 = vld [vmem:[#allocation17 + $0x18] sm:$0xff]
        %v1646 = vld [vmem:[#allocation17 + $0x20] sm:$0xff]
        %v1647 = vld [vmem:[#allocation17 + $0x28] sm:$0xff]
        %v1648 = vld [vmem:[#allocation17 + $0x30] sm:$0xff]
        %v1649 = vld [vmem:[#allocation17 + $0x38] sm:$0xff]
        %v1650 = vld [vmem:[#allocation17 + $0x40] sm:$0xff]
        %v1651 = vld [vmem:[#allocation17 + $0x48] sm:$0xff]
        %v1652 = vld [vmem:[#allocation17 + $0x50] sm:$0xff]
        %v1653 = vld [vmem:[#allocation17 + $0x58] sm:$0xff]
        %v1654 = vld [vmem:[#allocation17 + $0x60] sm:$0xff]
        %v1655 = vld [vmem:[#allocation17 + $0x68] sm:$0xff]
        %v1656 = vld [vmem:[#allocation17 + $0x70] sm:$0xff]
        %v1657 = vld [vmem:[#allocation17 + $0x78] sm:$0xff]
        %1658 = vmatprep.subr.mxu0 0.0
        %1659 = vmatpush1.msra.mxu0 %v1642
        %1660 = vmatprep.subr.mxu0 0.0
        %1661 = vmatpush1.msra.mxu0 %v1643
        %1662 = vmatprep.subr.mxu0 0.0
        %1663 = vmatpush1.msra.mxu0 %v1644
        %1664 = vmatprep.subr.mxu0 0.0
        %1665 = vmatpush1.msra.mxu0 %v1645
        %1666 = vmatprep.subr.mxu0 0.0
        %1667 = vmatpush1.msra.mxu0 %v1646
        %1668 = vmatprep.subr.mxu0 0.0
        %1669 = vmatpush1.msra.mxu0 %v1647
        %1670 = vmatprep.subr.mxu0 0.0
        %1671 = vmatpush1.msra.mxu0 %v1648
        %1672 = vmatprep.subr.mxu0 0.0
        %1673 = vmatpush1.msra.mxu0 %v1649
        %1674 = vmatprep.subr.mxu0 0.0
        %1675 = vmatpush1.msra.mxu0 %v1650
        %1676 = vmatprep.subr.mxu0 0.0
        %1677 = vmatpush1.msra.mxu0 %v1651
        %1678 = vmatprep.subr.mxu0 0.0
        %1679 = vmatpush1.msra.mxu0 %v1652
        %1680 = vmatprep.subr.mxu0 0.0
        %1681 = vmatpush1.msra.mxu0 %v1653
        %1682 = vmatprep.subr.mxu0 0.0
        %1683 = vmatpush1.msra.mxu0 %v1654
        %1684 = vmatprep.subr.mxu0 0.0
        %1685 = vmatpush1.msra.mxu0 %v1655
        %1686 = vmatprep.subr.mxu0 0.0
        %1687 = vmatpush1.msra.mxu0 %v1656
        %1688 = vmatprep.subr.mxu0 0.0
        %1689 = vmatpush1.msra.mxu0 %v1657
        %1690 = vmatprep.subr.mxu0 0.0
        %1691 = vmatpush1.msra.mxu0 0.0
        %1692 = vmatprep.subr.mxu0 0.0
        %1693 = vmatpush1.msra.mxu0 0.0
        %1694 = vmatprep.subr.mxu0 0.0
        %1695 = vmatpush1.msra.mxu0 0.0
        %1696 = vmatprep.subr.mxu0 0.0
        %1697 = vmatpush1.msra.mxu0 0.0
        %1698 = vmatprep.subr.mxu0 0.0
        %1699 = vmatpush1.msra.mxu0 0.0
        %1700 = vmatprep.subr.mxu0 0.0
        %1701 = vmatpush1.msra.mxu0 0.0
        %1702 = vmatprep.subr.mxu0 0.0
        %1703 = vmatpush1.msra.mxu0 0.0
        %1704 = vmatprep.subr.mxu0 0.0
        %1705 = vmatpush1.msra.mxu0 0.0
        %1706 = vmatprep.subr.mxu0 0.0
        %1707 = vmatpush1.msra.mxu0 0.0
        %1708 = vmatprep.subr.mxu0 0.0
        %1709 = vmatpush1.msra.mxu0 0.0
        %1710 = vmatprep.subr.mxu0 0.0
        %1711 = vmatpush1.msra.mxu0 0.0
        %1712 = vmatprep.subr.mxu0 0.0
        %1713 = vmatpush1.msra.mxu0 0.0
        %1714 = vmatprep.subr.mxu0 0.0
        %1715 = vmatpush1.msra.mxu0 0.0
        %1716 = vmatprep.subr.mxu0 0.0
        %1717 = vmatpush1.msra.mxu0 0.0
        %1718 = vmatprep.subr.mxu0 0.0
        %1719 = vmatpush1.msra.mxu0 0.0
        %1720 = vmatprep.subr.mxu0 0.0
        %1721 = vmatpush1.msra.mxu0 0.0
        %1722 = vmatprep.mubr.f32.mxu0 0.0
        %1723 = vmatmul.mubr.f32.gmra.mrb[0].mxu0 %v1469
        %v1724 = vpop.f32.mrb[0].mxu0
        %v1725 = vadd.f32 0.0, %v1724
        %v1726 = vpop.f32.mrb[0].mxu0
        %1727 = vdwg.mxu0
        %v1729 = vrot.slane %v1725, 7
        %v1731 = vsel %vm810, 0.0, %v1729
        %v1732 = vadd.f32 %v1639, %v1731
        %v1733 = vld [vmem:[#allocation19] sm:$0x1]
        %v1735 = vlaneseq
        %v1736 = vshrl.u32 %v1735, 7
        %v1737 = vsub.s32 0, %v1736
        %v1738 = vrot.slane %v1733, %v1737
        %v1740 = vadd.f32 %v1732, %v1738
        %v1741 = vmax.f32 %v1740, 0.0
        %1742 = vst [vmem:[%s695] sm:$0x3] %v1741
        %s1743 = sand.u32 %s299, 1
        %s1744 = scalar_lea.sflag [#allocation7], %s1743
        %s1745 = sand.u32 %s299, 1
        %s1746 = smul.addr %s1745, 16
        %s1747 = scalar_lea.vmem [#allocation23], %s1746
        %s1748 = sand.u32 %s45, 1
        %s1749 = scalar_lea.sflag [#allocation25], %s1748
        %s1750 = sand.u32 %s325, 1
        %s1751 = smul.addr %s1750, 8
        %s1752 = scalar_lea.vmem [#allocation24], %s1751
        %s1753 = sand.u32 %s45, 1
        %s1754 = scalar_lea.sflag [#allocation25], %s1753
        %s1755 = sand.u32 %s351, 1
        %s1756 = smul.addr %s1755, 4
        %s1757 = scalar_lea.vmem [#allocation26], %s1756
        %s1758 = sand.u32 %s377, 1
        %s1759 = scalar_lea.sflag [#allocation28], %s1758
        %s1760 = sand.u32 %s377, 1
        %s1761 = smul.addr %s1760, 2
        %s1762 = scalar_lea.vmem [#allocation27], %s1761
        // Predicated region
        $region109: #{tpu_custom_call.1} parent=63 // pred_check
          %p1763 = pneg %p309
        $region110: #{tpu_custom_call.1} parent=63 // pred_check_branch
          %1765 = sbr.rel (%p1763) target = $region112
        $region111: #{tpu_custom_call.1} parent=63 // pred_region
          %s1767 = ssub.s32 256, 256
          %1768 = vsyncadd %s1744, %s1767
          %s1769 = smul.addr %s45, 2
          %s1770 = smul.addr %s1769, 128
          %s1771 = scalar_lea.hbm %s11, %s1770
          %s1772 = sshll.u32 %s1747, 4
          %s1773 = int_to_ptr.vmem [resolvable:$true] %s1772
          %1778 = dma.vmem_to_hbm [thread:$0]  %s1773, 256, %s1771, %s1744, 128, 128, 8
        $region112: #{tpu_custom_call.1} parent=63 // pred_fallthru
          _
        // Predicated region
        $region113: #{tpu_custom_call.1} parent=63 // pred_check
          %p1779 = pneg %p335
        $region114: #{tpu_custom_call.1} parent=63 // pred_check_branch
          %1781 = sbr.rel (%p1779) target = $region116
        $region115: #{tpu_custom_call.1} parent=63 // pred_region
          %s1783 = ssub.s32 128, 128
          %1784 = vsyncadd %s1749, %s1783
          %s1785 = smul.addr %s45, 128
          %s1786 = scalar_lea.hbm %s12, %s1785
          %s1788 = sshll.u32 %s1752, 4
          %s1789 = int_to_ptr.vmem [resolvable:$true] %s1788
          %1791 = dma.vmem_to_hbm [thread:$0]  %s1789, 128, %s1786, %s1749
        $region116: #{tpu_custom_call.1} parent=63 // pred_fallthru
          _
        // Predicated region
        $region117: #{tpu_custom_call.1} parent=63 // pred_check
          %p1792 = pneg %p361
        $region118: #{tpu_custom_call.1} parent=63 // pred_check_branch
          %1794 = sbr.rel (%p1792) target = $region120
        $region119: #{tpu_custom_call.1} parent=63 // pred_region
          %s1796 = ssub.s32 64, 64
          %1797 = vsyncadd %s1754, %s1796
          %s1798 = smul.addr %s45, 64
          %s1799 = scalar_lea.hbm %s13, %s1798
          %s1801 = sshll.u32 %s1757, 4
          %s1802 = int_to_ptr.vmem [resolvable:$true] %s1801
          %1804 = dma.vmem_to_hbm [thread:$0]  %s1802, 64, %s1799, %s1754
        $region120: #{tpu_custom_call.1} parent=63 // pred_fallthru
          _
        // Predicated region
        $region121: #{tpu_custom_call.1} parent=63 // pred_check
          %p1805 = pneg %p387
        $region122: #{tpu_custom_call.1} parent=63 // pred_check_branch
          %1807 = sbr.rel (%p1805) target = $region124
        $region123: #{tpu_custom_call.1} parent=63 // pred_region
          %s1809 = ssub.s32 32, 32
          %1810 = vsyncadd %s1759, %s1809
          %s1811 = smul.addr %s45, 32
          %s1812 = scalar_lea.hbm %s14, %s1811
          %s1814 = sshll.u32 %s1762, 4
          %s1815 = int_to_ptr.vmem [resolvable:$true] %s1814
          %1817 = dma.vmem_to_hbm [thread:$0]  %s1815, 32, %s1812, %s1759
        $region124: #{tpu_custom_call.1} parent=63 // pred_fallthru
          _
      $region64: #{tpu_custom_call.1} parent=5 // pred_fallthru
        _
      %p1818 = scmp.le.s32.totalorder 2, %s40
      // Predicated region
      $region125: #{tpu_custom_call.1} parent=5 // pred_check
        %p1819 = pneg %p1818
      $region126: #{tpu_custom_call.1} parent=5 // pred_check_branch
        %1821 = sbr.rel (%p1819) target = $region128
      $region127: #{tpu_custom_call.1} parent=5 // pred_region
        %s1822 = ssub.s32 %s40, 2
        // Predicated region
        $region129: #{tpu_custom_call.1} parent=127 // pred_check
          %p1823 = pneg %p315
        $region130: #{tpu_custom_call.1} parent=127 // pred_check_branch
          %1825 = sbr.rel (%p1823) target = $region132
        $region131: #{tpu_custom_call.1} parent=127 // pred_region
          %s1826 = sand.u32 %s300, 1
          %s1827 = scalar_lea.sflag [#allocation7], %s1826
          %s1828 = sand.u32 %s300, 1
          %s1829 = smul.addr %s1828, 16
          %s1830 = scalar_lea.vmem [#allocation23], %s1829
          %1831 = dma.done %s1827, 256
        $region132: #{tpu_custom_call.1} parent=127 // pred_fallthru
          _
        // Predicated region
        $region133: #{tpu_custom_call.1} parent=127 // pred_check
          %p1832 = pneg %p341
        $region134: #{tpu_custom_call.1} parent=127 // pred_check_branch
          %1834 = sbr.rel (%p1832) target = $region136
        $region135: #{tpu_custom_call.1} parent=127 // pred_region
          %s1835 = sand.u32 %s46, 1
          %s1836 = scalar_lea.sflag [#allocation25], %s1835
          %s1837 = sand.u32 %s326, 1
          %s1838 = smul.addr %s1837, 8
          %s1839 = scalar_lea.vmem [#allocation24], %s1838
          %1840 = dma.done %s1836, 128
        $region136: #{tpu_custom_call.1} parent=127 // pred_fallthru
          _
        // Predicated region
        $region137: #{tpu_custom_call.1} parent=127 // pred_check
          %p1841 = pneg %p367
        $region138: #{tpu_custom_call.1} parent=127 // pred_check_branch
          %1843 = sbr.rel (%p1841) target = $region140
        $region139: #{tpu_custom_call.1} parent=127 // pred_region
          %s1844 = sand.u32 %s46, 1
          %s1845 = scalar_lea.sflag [#allocation25], %s1844
          %s1846 = sand.u32 %s352, 1
          %s1847 = smul.addr %s1846, 4
          %s1848 = scalar_lea.vmem [#allocation26], %s1847
          %1849 = dma.done %s1845, 64
        $region140: #{tpu_custom_call.1} parent=127 // pred_fallthru
          _
        // Predicated region
        $region141: #{tpu_custom_call.1} parent=127 // pred_check
          %p1850 = pneg %p393
        $region142: #{tpu_custom_call.1} parent=127 // pred_check_branch
          %1852 = sbr.rel (%p1850) target = $region144
        $region143: #{tpu_custom_call.1} parent=127 // pred_region
          %s1853 = sand.u32 %s378, 1
          %s1854 = scalar_lea.sflag [#allocation28], %s1853
          %s1855 = sand.u32 %s378, 1
          %s1856 = smul.addr %s1855, 2
          %s1857 = scalar_lea.vmem [#allocation27], %s1856
          %1858 = dma.done %s1854, 32
        $region144: #{tpu_custom_call.1} parent=127 // pred_fallthru
          _
      $region128: #{tpu_custom_call.1} parent=5 // pred_fallthru
        _
    $region6: #{tpu_custom_call.1} parent=1 // loop_footer
      %s44 = sadd.s32 1, %s40
    $region7: #{tpu_custom_call.1} parent=1 // loop_footer_branch
      %39 = sbr.rel target = $region3
    $region8: #{tpu_custom_call.1} parent=1 // loop_exit
      _
    %1859 = vsyncpa [#allocation6], 1
    %s1860 = scalar_lea.sflag [#allocation6], 1
    %1861 = vsyncpa %s1860, 1
    %1862 = vsyncpa [#allocation9], 1
    %1863 = vsyncpa [#allocation12], 1
    %1864 = vsyncpa [#allocation15], 1
    %1865 = vsyncpa [#allocation18], 1
    %1866 = vsyncpa [#allocation21], 1
    %s1867 = scalar_lea.sflag [#allocation21], 1
    %1868 = vsyncpa %s1867, 1
    %1869 = vsyncpa [#allocation7], 1
    %s1870 = scalar_lea.sflag [#allocation7], 1
    %1871 = vsyncpa %s1870, 1
    %1872 = vsyncpa [#allocation25], 1
    %s1873 = scalar_lea.sflag [#allocation25], 1
    %1874 = vsyncpa %s1873, 1
    %1875 = vsyncpa [#allocation28], 1
    %s1876 = scalar_lea.sflag [#allocation28], 1
    %1877 = vsyncpa %s1876, 1

</llo_original>
